<compile_context>
chip_gen: v5e
topology: v5e:2x2
jax: 0.10.0
libtpu: 0.0.40
codegen_flags: <defaults>
</compile_context>

<pallas_src>
import jax
import jax.numpy as jnp
from jax.experimental import pallas as pl
from jax.experimental.pallas import tpu as pltpu


# ------------------------------ Pallas kernel ------------------------------ #

def _lstm_decoder_kernel(x_ref, wx_ref, wh_ref, b_ref, wemb_ref, bemb_ref,
                         out_ref, gx_ref, hf_all, hb_all):
    T, B, D = x_ref.shape
    H8 = wx_ref.shape[1]
    H = H8 // 8
    H4 = 4 * H
    f32 = jnp.float32
    bf16 = jnp.bfloat16

    # --- 1) Input projection for both directions / all timesteps (one matmul).
    # Column layout of wx / gx: [i_f f_f g_f o_f | i_b f_b g_b o_b], each H wide
    # (PyTorch gate order per direction).  Bias (already summed ih+hh per
    # direction) is folded in here once.
    x_flat = x_ref[...].reshape(T * B, D)
    gx = jnp.dot(x_flat, wx_ref[...], preferred_element_type=f32) + b_ref[...]
    gx_ref[...] = gx.reshape(T, B, H8)

    # --- 2) Sequential recurrence, both directions per step, fully unrolled.
    def step(t, carry):
        h_cat, c_cat = carry                      # (B, 2H) f32 each
        rt = T - 1 - t

        # x-contribution: forward gates from time t, backward gates from rt.
        gates_x = jnp.concatenate(
            [gx_ref[t][:, :H4], gx_ref[rt][:, H4:]], axis=-1)     # (B, 8H)

        # Fused recurrent matmul (block-diagonal W_h built in the wrapper).
        gates_h = jnp.dot(h_cat.astype(bf16), wh_ref[...],
                          preferred_element_type=f32)             # (B, 8H)
        gates = gates_x + gates_h

        # Two full-width transcendentals, then slice.
        sig = jax.nn.sigmoid(gates)
        th = jnp.tanh(gates)

        c_f = sig[:, H:2 * H] * c_cat[:, :H] + sig[:, 0:H] * th[:, 2 * H:3 * H]
        c_b = (sig[:, 5 * H:6 * H] * c_cat[:, H:]
               + sig[:, 4 * H:5 * H] * th[:, 6 * H:7 * H])
        c_new = jnp.concatenate([c_f, c_b], axis=-1)              # (B, 2H)
        th_c = jnp.tanh(c_new)

        h_f = sig[:, 3 * H:4 * H] * th_c[:, :H]
        h_b = sig[:, 7 * H:8 * H] * th_c[:, H:]

        hf_all[t] = h_f            # forward hidden at time t
        hb_all[rt] = h_b           # backward hidden at time T-1-t

        return jnp.concatenate([h_f, h_b], axis=-1), c_new

    zeros = jnp.zeros((B, 2 * H), f32)
    jax.lax.fori_loop(0, T, step, (zeros, zeros), unroll=True)

    # --- 3) Embedding projection over the whole sequence, single writeback.
    hf_flat = hf_all[...].reshape(T * B, H).astype(bf16)
    hb_flat = hb_all[...].reshape(T * B, H).astype(bf16)
    out = (jnp.dot(hf_flat, wemb_ref[:H, :], preferred_element_type=f32)
           + jnp.dot(hb_flat, wemb_ref[H:, :], preferred_element_type=f32)
           + bemb_ref[...])
    out_ref[...] = out.reshape(T, B, -1)


# --------------------------------- wrapper ---------------------------------- #

def lstm_decoder_forward(x, p):
    T, B, D = x.shape
    H = p["weight_hh_l0"].shape[1]
    O = p["emb_weight"].shape[0]
    f32 = jnp.float32
    bf16 = jnp.bfloat16

    # Input-projection weights for both directions, columns [fwd 4H | bwd 4H].
    w_if = p["weight_ih_l0"].T                      # (D, 4H)  gate order i,f,g,o
    w_ib = p["weight_ih_l0_reverse"].T              # (D, 4H)
    wx = jnp.concatenate([w_if, w_ib], axis=1).astype(bf16)          # (D, 8H)

    # Block-diagonal recurrent weight: [hf | hb](B,2H) @ wh -> (B, 8H).
    w_hf = p["weight_hh_l0"].T                      # (H, 4H)
    w_hb = p["weight_hh_l0_reverse"].T              # (H, 4H)
    wh = jnp.zeros((2 * H, 8 * H), f32)
    wh = wh.at[:H, :4 * H].set(w_hf).at[H:, 4 * H:].set(w_hb).astype(bf16)

    # Summed biases per direction, laid out to match the gate columns.
    b = jnp.concatenate(
        [p["bias_ih_l0"] + p["bias_hh_l0"],
         p["bias_ih_l0_reverse"] + p["bias_hh_l0_reverse"]]
    ).reshape(1, 8 * H).astype(f32)

    w_emb = p["emb_weight"].T.astype(bf16)          # (2H, O)
    b_emb = p["emb_bias"].reshape(1, O).astype(f32)

    out = pl.pallas_call(
        _lstm_decoder_kernel,
        out_shape=jax.ShapeDtypeStruct((T, B, O), f32),
        grid_spec=pltpu.PrefetchScalarGridSpec(
            num_scalar_prefetch=0,
            grid=(1,),
            in_specs=[
                pl.BlockSpec((T, B, D), lambda i: (0, 0, 0)),       # x (bf16)
                pl.BlockSpec((D, 8 * H), lambda i: (0, 0)),         # wx
                pl.BlockSpec((2 * H, 8 * H), lambda i: (0, 0)),     # wh
                pl.BlockSpec((1, 8 * H), lambda i: (0, 0)),         # bias
                pl.BlockSpec((2 * H, O), lambda i: (0, 0)),         # w_emb
                pl.BlockSpec((1, O), lambda i: (0, 0)),             # b_emb
            ],
            out_specs=pl.BlockSpec((T, B, O), lambda i: (0, 0, 0)),
            scratch_shapes=[
                pltpu.VMEM((T, B, 8 * H), f32),   # precomputed input gates
                pltpu.VMEM((T, B, H), f32),       # forward hidden states
                pltpu.VMEM((T, B, H), f32),       # backward hidden states
            ],
        ),
        compiler_params=pltpu.CompilerParams(
            dimension_semantics=("arbitrary",)),
    )(x.astype(bf16), wx, wh, b, w_emb, b_emb)

    return out


# ----------------------------- pure-JAX reference --------------------------- #

def lstm_decoder_reference(x, p):
    H = p["weight_hh_l0"].shape[1]

    def run_dir(x_seq, w_ih, w_hh, b_ih, b_hh):
        B = x_seq.shape[1]

        def step(carry, xt):
            h, c = carry
            gates = xt @ w_ih.T + b_ih + h @ w_hh.T + b_hh
            i_g, f_g, g_g, o_g = jnp.split(gates, 4, axis=-1)
            i_g = jax.nn.sigmoid(i_g)
            f_g = jax.nn.sigmoid(f_g)
            g_g = jnp.tanh(g_g)
            o_g = jax.nn.sigmoid(o_g)
            c = f_g * c + i_g * g_g
            h = o_g * jnp.tanh(c)
            return (h, c), h

        init = (jnp.zeros((B, H), jnp.float32), jnp.zeros((B, H), jnp.float32))
        _, hs = jax.lax.scan(step, init, x_seq)
        return hs

    hf = run_dir(x, p["weight_ih_l0"], p["weight_hh_l0"],
                 p["bias_ih_l0"], p["bias_hh_l0"])
    hb = run_dir(x[::-1], p["weight_ih_l0_reverse"], p["weight_hh_l0_reverse"],
                 p["bias_ih_l0_reverse"], p["bias_hh_l0_reverse"])[::-1]
    out = jnp.concatenate([hf, hb], axis=-1)
    T, B, h2 = out.shape
    out = out.reshape(T * B, h2) @ p["emb_weight"].T + p["emb_bias"]
    return out.reshape(T, B, -1)


# ----------------------------------- main ----------------------------------- #

if __name__ == "__main__":
    T, B = 8, 2
    input_dim, hidden_dim, output_dim = 32, 32, 16
    H = hidden_dim

    key = jax.random.PRNGKey(0)
    keys = jax.random.split(key, 12)
    k = 1.0 / jnp.sqrt(jnp.float32(H))  # PyTorch nn.LSTM / nn.Linear init range

    def u(kk, shape):
        return jax.random.uniform(kk, shape, jnp.float32, -k, k)

    params = {
        "weight_ih_l0":          u(keys[0], (4 * H, input_dim)),
        "weight_hh_l0":          u(keys[1], (4 * H, H)),
        "bias_ih_l0":            u(keys[2], (4 * H,)),
        "bias_hh_l0":            u(keys[3], (4 * H,)),
        "weight_ih_l0_reverse":  u(keys[4], (4 * H, input_dim)),
        "weight_hh_l0_reverse":  u(keys[5], (4 * H, H)),
        "bias_ih_l0_reverse":    u(keys[6], (4 * H,)),
        "bias_hh_l0_reverse":    u(keys[7], (4 * H,)),
        "emb_weight":            u(keys[8], (output_dim, 2 * H)),
        "emb_bias":              u(keys[9], (output_dim,)),
    }

    x = jax.random.normal(keys[10], (T, B, input_dim), jnp.float32)

    out = jax.jit(lstm_decoder_forward)(x, params)
    out = jax.block_until_ready(out)

    ref = lstm_decoder_reference(x, params)
    assert out.shape == (T, B, output_dim), out.shape
    max_err = float(jnp.max(jnp.abs(out - ref)))
    # bf16 matmul operands with f32 accumulation: allow a slightly looser bound.
    if max_err > 3e-2:
        raise AssertionError(f"mismatch vs reference, max_err={max_err}")

    print("KERNEL_OK")
</pallas_src>

<mosaic_0001>
module attributes {stable_mosaic.version = 11 : i64} {
  func.func @_lstm_decoder_kernel(%arg0: i32, %arg1: memref<8x2x32xbf16, #tpu.memory_space<vmem>>, %arg2: memref<32x256xbf16, #tpu.memory_space<vmem>>, %arg3: memref<64x256xbf16, #tpu.memory_space<vmem>>, %arg4: memref<1x256xf32, #tpu.memory_space<vmem>>, %arg5: memref<64x16xbf16, #tpu.memory_space<vmem>>, %arg6: memref<1x16xf32, #tpu.memory_space<vmem>>, %arg7: memref<8x2x16xf32, #tpu.memory_space<vmem>>, %arg8: memref<8x2x256xf32, #tpu.memory_space<vmem>>, %arg9: memref<8x2x32xf32, #tpu.memory_space<vmem>>, %arg10: memref<8x2x32xf32, #tpu.memory_space<vmem>>) attributes {dimension_semantics = [#tpu.dimension_semantics<arbitrary>], iteration_bounds = array<i64: 1>, scalar_prefetch = 0 : i64, scratch_operands = 3 : i64, tpu.core_type = #tpu.core_type<tc>, window_params = [{pipeline_mode = #tpu.pipeline_mode<synchronous>, transform_indices = @transform_0, window_bounds = array<i64: 8, 2, 32>}, {pipeline_mode = #tpu.pipeline_mode<synchronous>, transform_indices = @transform_1, window_bounds = array<i64: 32, 256>}, {pipeline_mode = #tpu.pipeline_mode<synchronous>, transform_indices = @transform_2, window_bounds = array<i64: 64, 256>}, {pipeline_mode = #tpu.pipeline_mode<synchronous>, transform_indices = @transform_3, window_bounds = array<i64: 1, 256>}, {pipeline_mode = #tpu.pipeline_mode<synchronous>, transform_indices = @transform_4, window_bounds = array<i64: 64, 16>}, {pipeline_mode = #tpu.pipeline_mode<synchronous>, transform_indices = @transform_5, window_bounds = array<i64: 1, 16>}, {pipeline_mode = #tpu.pipeline_mode<synchronous>, transform_indices = @transform_6, window_bounds = array<i64: 8, 2, 16>}]} {
    %c0 = arith.constant 0 : index
    %c0_0 = arith.constant 0 : index
    %c0_1 = arith.constant 0 : index
    %0 = vector.load %arg1[%c0, %c0_0, %c0_1] : memref<8x2x32xbf16, #tpu.memory_space<vmem>>, vector<8x2x32xbf16>
    %1 = vector.shape_cast %0 : vector<8x2x32xbf16> to vector<16x32xbf16>
    %c0_2 = arith.constant 0 : index
    %c0_3 = arith.constant 0 : index
    %2 = vector.load %arg2[%c0_2, %c0_3] : memref<32x256xbf16, #tpu.memory_space<vmem>>, vector<32x256xbf16>
    %cst = arith.constant dense<0.000000e+00> : vector<16x256xf32>
    %3 = tpu.matmul %1, %2, %cst {dimension_numbers = #tpu.dot_dimension_numbers<[1], [0], [0], [1], [0, 0, 1, 1], [], []>} : vector<16x32xbf16>, vector<32x256xbf16>, vector<16x256xf32> -> vector<16x256xf32>
    %c0_4 = arith.constant 0 : index
    %c0_5 = arith.constant 0 : index
    %4 = vector.load %arg4[%c0_4, %c0_5] : memref<1x256xf32, #tpu.memory_space<vmem>>, vector<1x256xf32>
    %5 = vector.broadcast %4 : vector<1x256xf32> to vector<16x256xf32>
    %6 = arith.addf %3, %5 : vector<16x256xf32>
    %7 = vector.shape_cast %6 : vector<16x256xf32> to vector<8x2x256xf32>
    %c0_6 = arith.constant 0 : index
    %c0_7 = arith.constant 0 : index
    %c0_8 = arith.constant 0 : index
    %8 = vector.load %arg8[%c0_6, %c0_7, %c0_8] : memref<8x2x256xf32, #tpu.memory_space<vmem>>, vector<8x2x256xf32>
    tpu.vector_store %arg8[%c0_6, %c0_7, %c0_8], %7 {strides = array<i32>} : memref<8x2x256xf32, #tpu.memory_space<vmem>>, vector<8x2x256xf32>,
    %cst_9 = arith.constant 0.000000e+00 : f32
    %9 = vector.broadcast %cst_9 : f32 to vector<2x64xf32>
    %c0_i32 = arith.constant 0 : i32
    %c7_i32 = arith.constant 7 : i32
    %10 = arith.subi %c7_i32, %c0_i32 : i32
    %11 = arith.index_cast %c0_i32 : i32 to index
    %c0_10 = arith.constant 0 : index
    %c0_11 = arith.constant 0 : index
    %12 = vector.load %arg8[%11, %c0_10, %c0_11] : memref<8x2x256xf32, #tpu.memory_space<vmem>>, vector<1x2x256xf32>
    %13 = vector.shape_cast %12 : vector<1x2x256xf32> to vector<2x256xf32>
    %14 = vector.extract_strided_slice %13 {offsets = [0, 0], sizes = [2, 128], strides = [1, 1]} : vector<2x256xf32> to vector<2x128xf32>
    %15 = arith.index_cast %10 : i32 to index
    %c0_12 = arith.constant 0 : index
    %c0_13 = arith.constant 0 : index
    %16 = vector.load %arg8[%15, %c0_12, %c0_13] : memref<8x2x256xf32, #tpu.memory_space<vmem>>, vector<1x2x256xf32>
    %17 = vector.shape_cast %16 : vector<1x2x256xf32> to vector<2x256xf32>
    %18 = vector.extract_strided_slice %17 {offsets = [0, 128], sizes = [2, 128], strides = [1, 1]} : vector<2x256xf32> to vector<2x128xf32>
    %19 = tpu.concatenate %14, %18 in 1 : vector<2x128xf32>, vector<2x128xf32> -> vector<2x256xf32>
    %20 = arith.truncf %9 : vector<2x64xf32> to vector<2x64xbf16>
    %c0_14 = arith.constant 0 : index
    %c0_15 = arith.constant 0 : index
    %21 = vector.load %arg3[%c0_14, %c0_15] : memref<64x256xbf16, #tpu.memory_space<vmem>>, vector<64x256xbf16>
    %cst_16 = arith.constant dense<0.000000e+00> : vector<2x256xf32>
    %22 = tpu.matmul %20, %21, %cst_16 {dimension_numbers = #tpu.dot_dimension_numbers<[1], [0], [0], [1], [0, 0, 1, 1], [], []>} : vector<2x64xbf16>, vector<64x256xbf16>, vector<2x256xf32> -> vector<2x256xf32>
    %23 = arith.addf %19, %22 : vector<2x256xf32>
    %24 = arith.negf %23 : vector<2x256xf32>
    %25 = math.exp %24 : vector<2x256xf32>
    %cst_17 = arith.constant 1.000000e+00 : f32
    %26 = vector.broadcast %cst_17 : f32 to vector<2x256xf32>
    %27 = arith.addf %26, %25 : vector<2x256xf32>
    %28 = arith.divf %26, %27 : vector<2x256xf32>
    %29 = math.tanh %23 : vector<2x256xf32>
    %30 = vector.extract_strided_slice %28 {offsets = [0, 32], sizes = [2, 32], strides = [1, 1]} : vector<2x256xf32> to vector<2x32xf32>
    %31 = vector.extract_strided_slice %9 {offsets = [0, 0], sizes = [2, 32], strides = [1, 1]} : vector<2x64xf32> to vector<2x32xf32>
    %32 = arith.mulf %30, %31 : vector<2x32xf32>
    %33 = vector.extract_strided_slice %28 {offsets = [0, 0], sizes = [2, 32], strides = [1, 1]} : vector<2x256xf32> to vector<2x32xf32>
    %34 = vector.extract_strided_slice %29 {offsets = [0, 64], sizes = [2, 32], strides = [1, 1]} : vector<2x256xf32> to vector<2x32xf32>
    %35 = arith.mulf %33, %34 : vector<2x32xf32>
    %36 = arith.addf %32, %35 : vector<2x32xf32>
    %37 = vector.extract_strided_slice %28 {offsets = [0, 160], sizes = [2, 32], strides = [1, 1]} : vector<2x256xf32> to vector<2x32xf32>
    %38 = vector.extract_strided_slice %9 {offsets = [0, 32], sizes = [2, 32], strides = [1, 1]} : vector<2x64xf32> to vector<2x32xf32>
    %39 = arith.mulf %37, %38 : vector<2x32xf32>
    %40 = vector.extract_strided_slice %28 {offsets = [0, 128], sizes = [2, 32], strides = [1, 1]} : vector<2x256xf32> to vector<2x32xf32>
    %41 = vector.extract_strided_slice %29 {offsets = [0, 192], sizes = [2, 32], strides = [1, 1]} : vector<2x256xf32> to vector<2x32xf32>
    %42 = arith.mulf %40, %41 : vector<2x32xf32>
    %43 = arith.addf %39, %42 : vector<2x32xf32>
    %44 = tpu.concatenate %36, %43 in 1 : vector<2x32xf32>, vector<2x32xf32> -> vector<2x64xf32>
    %45 = math.tanh %44 : vector<2x64xf32>
    %46 = vector.extract_strided_slice %28 {offsets = [0, 96], sizes = [2, 32], strides = [1, 1]} : vector<2x256xf32> to vector<2x32xf32>
    %47 = vector.extract_strided_slice %45 {offsets = [0, 0], sizes = [2, 32], strides = [1, 1]} : vector<2x64xf32> to vector<2x32xf32>
    %48 = arith.mulf %46, %47 : vector<2x32xf32>
    %49 = vector.extract_strided_slice %28 {offsets = [0, 224], sizes = [2, 32], strides = [1, 1]} : vector<2x256xf32> to vector<2x32xf32>
    %50 = vector.extract_strided_slice %45 {offsets = [0, 32], sizes = [2, 32], strides = [1, 1]} : vector<2x64xf32> to vector<2x32xf32>
    %51 = arith.mulf %49, %50 : vector<2x32xf32>
    %52 = arith.index_cast %c0_i32 : i32 to index
    %c0_18 = arith.constant 0 : index
    %c0_19 = arith.constant 0 : index
    %53 = vector.load %arg9[%52, %c0_18, %c0_19] : memref<8x2x32xf32, #tpu.memory_space<vmem>>, vector<1x2x32xf32>
    %54 = vector.shape_cast %53 : vector<1x2x32xf32> to vector<2x32xf32>
    %55 = vector.shape_cast %48 : vector<2x32xf32> to vector<1x2x32xf32>
    tpu.vector_store %arg9[%52, %c0_18, %c0_19], %55 {strides = array<i32>} : memref<8x2x32xf32, #tpu.memory_space<vmem>>, vector<1x2x32xf32>,
    %56 = arith.index_cast %10 : i32 to index
    %c0_20 = arith.constant 0 : index
    %c0_21 = arith.constant 0 : index
    %57 = vector.load %arg10[%56, %c0_20, %c0_21] : memref<8x2x32xf32, #tpu.memory_space<vmem>>, vector<1x2x32xf32>
    %58 = vector.shape_cast %57 : vector<1x2x32xf32> to vector<2x32xf32>
    %59 = vector.shape_cast %51 : vector<2x32xf32> to vector<1x2x32xf32>
    tpu.vector_store %arg10[%56, %c0_20, %c0_21], %59 {strides = array<i32>} : memref<8x2x32xf32, #tpu.memory_space<vmem>>, vector<1x2x32xf32>,
    %60 = tpu.concatenate %48, %51 in 1 : vector<2x32xf32>, vector<2x32xf32> -> vector<2x64xf32>
    %c1_i32 = arith.constant 1 : i32
    %c7_i32_22 = arith.constant 7 : i32
    %61 = arith.subi %c7_i32_22, %c1_i32 : i32
    %62 = arith.index_cast %c1_i32 : i32 to index
    %c0_23 = arith.constant 0 : index
    %c0_24 = arith.constant 0 : index
    %63 = vector.load %arg8[%62, %c0_23, %c0_24] : memref<8x2x256xf32, #tpu.memory_space<vmem>>, vector<1x2x256xf32>
    %64 = vector.shape_cast %63 : vector<1x2x256xf32> to vector<2x256xf32>
    %65 = vector.extract_strided_slice %64 {offsets = [0, 0], sizes = [2, 128], strides = [1, 1]} : vector<2x256xf32> to vector<2x128xf32>
    %66 = arith.index_cast %61 : i32 to index
    %c0_25 = arith.constant 0 : index
    %c0_26 = arith.constant 0 : index
    %67 = vector.load %arg8[%66, %c0_25, %c0_26] : memref<8x2x256xf32, #tpu.memory_space<vmem>>, vector<1x2x256xf32>
    %68 = vector.shape_cast %67 : vector<1x2x256xf32> to vector<2x256xf32>
    %69 = vector.extract_strided_slice %68 {offsets = [0, 128], sizes = [2, 128], strides = [1, 1]} : vector<2x256xf32> to vector<2x128xf32>
    %70 = tpu.concatenate %65, %69 in 1 : vector<2x128xf32>, vector<2x128xf32> -> vector<2x256xf32>
    %71 = arith.truncf %60 : vector<2x64xf32> to vector<2x64xbf16>
    %c0_27 = arith.constant 0 : index
    %c0_28 = arith.constant 0 : index
    %72 = vector.load %arg3[%c0_27, %c0_28] : memref<64x256xbf16, #tpu.memory_space<vmem>>, vector<64x256xbf16>
    %cst_29 = arith.constant dense<0.000000e+00> : vector<2x256xf32>
    %73 = tpu.matmul %71, %72, %cst_29 {dimension_numbers = #tpu.dot_dimension_numbers<[1], [0], [0], [1], [0, 0, 1, 1], [], []>} : vector<2x64xbf16>, vector<64x256xbf16>, vector<2x256xf32> -> vector<2x256xf32>
    %74 = arith.addf %70, %73 : vector<2x256xf32>
    %75 = arith.negf %74 : vector<2x256xf32>
    %76 = math.exp %75 : vector<2x256xf32>
    %cst_30 = arith.constant 1.000000e+00 : f32
    %77 = vector.broadcast %cst_30 : f32 to vector<2x256xf32>
    %78 = arith.addf %77, %76 : vector<2x256xf32>
    %79 = arith.divf %77, %78 : vector<2x256xf32>
    %80 = math.tanh %74 : vector<2x256xf32>
    %81 = vector.extract_strided_slice %79 {offsets = [0, 32], sizes = [2, 32], strides = [1, 1]} : vector<2x256xf32> to vector<2x32xf32>
    %82 = vector.extract_strided_slice %44 {offsets = [0, 0], sizes = [2, 32], strides = [1, 1]} : vector<2x64xf32> to vector<2x32xf32>
    %83 = arith.mulf %81, %82 : vector<2x32xf32>
    %84 = vector.extract_strided_slice %79 {offsets = [0, 0], sizes = [2, 32], strides = [1, 1]} : vector<2x256xf32> to vector<2x32xf32>
    %85 = vector.extract_strided_slice %80 {offsets = [0, 64], sizes = [2, 32], strides = [1, 1]} : vector<2x256xf32> to vector<2x32xf32>
    %86 = arith.mulf %84, %85 : vector<2x32xf32>
    %87 = arith.addf %83, %86 : vector<2x32xf32>
    %88 = vector.extract_strided_slice %79 {offsets = [0, 160], sizes = [2, 32], strides = [1, 1]} : vector<2x256xf32> to vector<2x32xf32>
    %89 = vector.extract_strided_slice %44 {offsets = [0, 32], sizes = [2, 32], strides = [1, 1]} : vector<2x64xf32> to vector<2x32xf32>
    %90 = arith.mulf %88, %89 : vector<2x32xf32>
    %91 = vector.extract_strided_slice %79 {offsets = [0, 128], sizes = [2, 32], strides = [1, 1]} : vector<2x256xf32> to vector<2x32xf32>
    %92 = vector.extract_strided_slice %80 {offsets = [0, 192], sizes = [2, 32], strides = [1, 1]} : vector<2x256xf32> to vector<2x32xf32>
    %93 = arith.mulf %91, %92 : vector<2x32xf32>
    %94 = arith.addf %90, %93 : vector<2x32xf32>
    %95 = tpu.concatenate %87, %94 in 1 : vector<2x32xf32>, vector<2x32xf32> -> vector<2x64xf32>
    %96 = math.tanh %95 : vector<2x64xf32>
    %97 = vector.extract_strided_slice %79 {offsets = [0, 96], sizes = [2, 32], strides = [1, 1]} : vector<2x256xf32> to vector<2x32xf32>
    %98 = vector.extract_strided_slice %96 {offsets = [0, 0], sizes = [2, 32], strides = [1, 1]} : vector<2x64xf32> to vector<2x32xf32>
    %99 = arith.mulf %97, %98 : vector<2x32xf32>
    %100 = vector.extract_strided_slice %79 {offsets = [0, 224], sizes = [2, 32], strides = [1, 1]} : vector<2x256xf32> to vector<2x32xf32>
    %101 = vector.extract_strided_slice %96 {offsets = [0, 32], sizes = [2, 32], strides = [1, 1]} : vector<2x64xf32> to vector<2x32xf32>
    %102 = arith.mulf %100, %101 : vector<2x32xf32>
    %103 = arith.index_cast %c1_i32 : i32 to index
    %c0_31 = arith.constant 0 : index
    %c0_32 = arith.constant 0 : index
    %104 = vector.load %arg9[%103, %c0_31, %c0_32] : memref<8x2x32xf32, #tpu.memory_space<vmem>>, vector<1x2x32xf32>
    %105 = vector.shape_cast %104 : vector<1x2x32xf32> to vector<2x32xf32>
    %106 = vector.shape_cast %99 : vector<2x32xf32> to vector<1x2x32xf32>
    tpu.vector_store %arg9[%103, %c0_31, %c0_32], %106 {strides = array<i32>} : memref<8x2x32xf32, #tpu.memory_space<vmem>>, vector<1x2x32xf32>,
    %107 = arith.index_cast %61 : i32 to index
    %c0_33 = arith.constant 0 : index
    %c0_34 = arith.constant 0 : index
    %108 = vector.load %arg10[%107, %c0_33, %c0_34] : memref<8x2x32xf32, #tpu.memory_space<vmem>>, vector<1x2x32xf32>
    %109 = vector.shape_cast %108 : vector<1x2x32xf32> to vector<2x32xf32>
    %110 = vector.shape_cast %102 : vector<2x32xf32> to vector<1x2x32xf32>
    tpu.vector_store %arg10[%107, %c0_33, %c0_34], %110 {strides = array<i32>} : memref<8x2x32xf32, #tpu.memory_space<vmem>>, vector<1x2x32xf32>,
    %111 = tpu.concatenate %99, %102 in 1 : vector<2x32xf32>, vector<2x32xf32> -> vector<2x64xf32>
    %c2_i32 = arith.constant 2 : i32
    %c7_i32_35 = arith.constant 7 : i32
    %112 = arith.subi %c7_i32_35, %c2_i32 : i32
    %113 = arith.index_cast %c2_i32 : i32 to index
    %c0_36 = arith.constant 0 : index
    %c0_37 = arith.constant 0 : index
    %114 = vector.load %arg8[%113, %c0_36, %c0_37] : memref<8x2x256xf32, #tpu.memory_space<vmem>>, vector<1x2x256xf32>
    %115 = vector.shape_cast %114 : vector<1x2x256xf32> to vector<2x256xf32>
    %116 = vector.extract_strided_slice %115 {offsets = [0, 0], sizes = [2, 128], strides = [1, 1]} : vector<2x256xf32> to vector<2x128xf32>
    %117 = arith.index_cast %112 : i32 to index
    %c0_38 = arith.constant 0 : index
    %c0_39 = arith.constant 0 : index
    %118 = vector.load %arg8[%117, %c0_38, %c0_39] : memref<8x2x256xf32, #tpu.memory_space<vmem>>, vector<1x2x256xf32>
    %119 = vector.shape_cast %118 : vector<1x2x256xf32> to vector<2x256xf32>
    %120 = vector.extract_strided_slice %119 {offsets = [0, 128], sizes = [2, 128], strides = [1, 1]} : vector<2x256xf32> to vector<2x128xf32>
    %121 = tpu.concatenate %116, %120 in 1 : vector<2x128xf32>, vector<2x128xf32> -> vector<2x256xf32>
    %122 = arith.truncf %111 : vector<2x64xf32> to vector<2x64xbf16>
    %c0_40 = arith.constant 0 : index
    %c0_41 = arith.constant 0 : index
    %123 = vector.load %arg3[%c0_40, %c0_41] : memref<64x256xbf16, #tpu.memory_space<vmem>>, vector<64x256xbf16>
    %cst_42 = arith.constant dense<0.000000e+00> : vector<2x256xf32>
    %124 = tpu.matmul %122, %123, %cst_42 {dimension_numbers = #tpu.dot_dimension_numbers<[1], [0], [0], [1], [0, 0, 1, 1], [], []>} : vector<2x64xbf16>, vector<64x256xbf16>, vector<2x256xf32> -> vector<2x256xf32>
    %125 = arith.addf %121, %124 : vector<2x256xf32>
    %126 = arith.negf %125 : vector<2x256xf32>
    %127 = math.exp %126 : vector<2x256xf32>
    %cst_43 = arith.constant 1.000000e+00 : f32
    %128 = vector.broadcast %cst_43 : f32 to vector<2x256xf32>
    %129 = arith.addf %128, %127 : vector<2x256xf32>
    %130 = arith.divf %128, %129 : vector<2x256xf32>
    %131 = math.tanh %125 : vector<2x256xf32>
    %132 = vector.extract_strided_slice %130 {offsets = [0, 32], sizes = [2, 32], strides = [1, 1]} : vector<2x256xf32> to vector<2x32xf32>
    %133 = vector.extract_strided_slice %95 {offsets = [0, 0], sizes = [2, 32], strides = [1, 1]} : vector<2x64xf32> to vector<2x32xf32>
    %134 = arith.mulf %132, %133 : vector<2x32xf32>
    %135 = vector.extract_strided_slice %130 {offsets = [0, 0], sizes = [2, 32], strides = [1, 1]} : vector<2x256xf32> to vector<2x32xf32>
    %136 = vector.extract_strided_slice %131 {offsets = [0, 64], sizes = [2, 32], strides = [1, 1]} : vector<2x256xf32> to vector<2x32xf32>
    %137 = arith.mulf %135, %136 : vector<2x32xf32>
    %138 = arith.addf %134, %137 : vector<2x32xf32>
    %139 = vector.extract_strided_slice %130 {offsets = [0, 160], sizes = [2, 32], strides = [1, 1]} : vector<2x256xf32> to vector<2x32xf32>
    %140 = vector.extract_strided_slice %95 {offsets = [0, 32], sizes = [2, 32], strides = [1, 1]} : vector<2x64xf32> to vector<2x32xf32>
    %141 = arith.mulf %139, %140 : vector<2x32xf32>
    %142 = vector.extract_strided_slice %130 {offsets = [0, 128], sizes = [2, 32], strides = [1, 1]} : vector<2x256xf32> to vector<2x32xf32>
    %143 = vector.extract_strided_slice %131 {offsets = [0, 192], sizes = [2, 32], strides = [1, 1]} : vector<2x256xf32> to vector<2x32xf32>
    %144 = arith.mulf %142, %143 : vector<2x32xf32>
    %145 = arith.addf %141, %144 : vector<2x32xf32>
    %146 = tpu.concatenate %138, %145 in 1 : vector<2x32xf32>, vector<2x32xf32> -> vector<2x64xf32>
    %147 = math.tanh %146 : vector<2x64xf32>
    %148 = vector.extract_strided_slice %130 {offsets = [0, 96], sizes = [2, 32], strides = [1, 1]} : vector<2x256xf32> to vector<2x32xf32>
    %149 = vector.extract_strided_slice %147 {offsets = [0, 0], sizes = [2, 32], strides = [1, 1]} : vector<2x64xf32> to vector<2x32xf32>
    %150 = arith.mulf %148, %149 : vector<2x32xf32>
    %151 = vector.extract_strided_slice %130 {offsets = [0, 224], sizes = [2, 32], strides = [1, 1]} : vector<2x256xf32> to vector<2x32xf32>
    %152 = vector.extract_strided_slice %147 {offsets = [0, 32], sizes = [2, 32], strides = [1, 1]} : vector<2x64xf32> to vector<2x32xf32>
    %153 = arith.mulf %151, %152 : vector<2x32xf32>
    %154 = arith.index_cast %c2_i32 : i32 to index
    %c0_44 = arith.constant 0 : index
    %c0_45 = arith.constant 0 : index
    %155 = vector.load %arg9[%154, %c0_44, %c0_45] : memref<8x2x32xf32, #tpu.memory_space<vmem>>, vector<1x2x32xf32>
    %156 = vector.shape_cast %155 : vector<1x2x32xf32> to vector<2x32xf32>
    %157 = vector.shape_cast %150 : vector<2x32xf32> to vector<1x2x32xf32>
    tpu.vector_store %arg9[%154, %c0_44, %c0_45], %157 {strides = array<i32>} : memref<8x2x32xf32, #tpu.memory_space<vmem>>, vector<1x2x32xf32>,
    %158 = arith.index_cast %112 : i32 to index
    %c0_46 = arith.constant 0 : index
    %c0_47 = arith.constant 0 : index
    %159 = vector.load %arg10[%158, %c0_46, %c0_47] : memref<8x2x32xf32, #tpu.memory_space<vmem>>, vector<1x2x32xf32>
    %160 = vector.shape_cast %159 : vector<1x2x32xf32> to vector<2x32xf32>
    %161 = vector.shape_cast %153 : vector<2x32xf32> to vector<1x2x32xf32>
    tpu.vector_store %arg10[%158, %c0_46, %c0_47], %161 {strides = array<i32>} : memref<8x2x32xf32, #tpu.memory_space<vmem>>, vector<1x2x32xf32>,
    %162 = tpu.concatenate %150, %153 in 1 : vector<2x32xf32>, vector<2x32xf32> -> vector<2x64xf32>
    %c3_i32 = arith.constant 3 : i32
    %c7_i32_48 = arith.constant 7 : i32
    %163 = arith.subi %c7_i32_48, %c3_i32 : i32
    %164 = arith.index_cast %c3_i32 : i32 to index
    %c0_49 = arith.constant 0 : index
    %c0_50 = arith.constant 0 : index
    %165 = vector.load %arg8[%164, %c0_49, %c0_50] : memref<8x2x256xf32, #tpu.memory_space<vmem>>, vector<1x2x256xf32>
    %166 = vector.shape_cast %165 : vector<1x2x256xf32> to vector<2x256xf32>
    %167 = vector.extract_strided_slice %166 {offsets = [0, 0], sizes = [2, 128], strides = [1, 1]} : vector<2x256xf32> to vector<2x128xf32>
    %168 = arith.index_cast %163 : i32 to index
    %c0_51 = arith.constant 0 : index
    %c0_52 = arith.constant 0 : index
    %169 = vector.load %arg8[%168, %c0_51, %c0_52] : memref<8x2x256xf32, #tpu.memory_space<vmem>>, vector<1x2x256xf32>
    %170 = vector.shape_cast %169 : vector<1x2x256xf32> to vector<2x256xf32>
    %171 = vector.extract_strided_slice %170 {offsets = [0, 128], sizes = [2, 128], strides = [1, 1]} : vector<2x256xf32> to vector<2x128xf32>
    %172 = tpu.concatenate %167, %171 in 1 : vector<2x128xf32>, vector<2x128xf32> -> vector<2x256xf32>
    %173 = arith.truncf %162 : vector<2x64xf32> to vector<2x64xbf16>
    %c0_53 = arith.constant 0 : index
    %c0_54 = arith.constant 0 : index
    %174 = vector.load %arg3[%c0_53, %c0_54] : memref<64x256xbf16, #tpu.memory_space<vmem>>, vector<64x256xbf16>
    %cst_55 = arith.constant dense<0.000000e+00> : vector<2x256xf32>
    %175 = tpu.matmul %173, %174, %cst_55 {dimension_numbers = #tpu.dot_dimension_numbers<[1], [0], [0], [1], [0, 0, 1, 1], [], []>} : vector<2x64xbf16>, vector<64x256xbf16>, vector<2x256xf32> -> vector<2x256xf32>
    %176 = arith.addf %172, %175 : vector<2x256xf32>
    %177 = arith.negf %176 : vector<2x256xf32>
    %178 = math.exp %177 : vector<2x256xf32>
    %cst_56 = arith.constant 1.000000e+00 : f32
    %179 = vector.broadcast %cst_56 : f32 to vector<2x256xf32>
    %180 = arith.addf %179, %178 : vector<2x256xf32>
    %181 = arith.divf %179, %180 : vector<2x256xf32>
    %182 = math.tanh %176 : vector<2x256xf32>
    %183 = vector.extract_strided_slice %181 {offsets = [0, 32], sizes = [2, 32], strides = [1, 1]} : vector<2x256xf32> to vector<2x32xf32>
    %184 = vector.extract_strided_slice %146 {offsets = [0, 0], sizes = [2, 32], strides = [1, 1]} : vector<2x64xf32> to vector<2x32xf32>
    %185 = arith.mulf %183, %184 : vector<2x32xf32>
    %186 = vector.extract_strided_slice %181 {offsets = [0, 0], sizes = [2, 32], strides = [1, 1]} : vector<2x256xf32> to vector<2x32xf32>
    %187 = vector.extract_strided_slice %182 {offsets = [0, 64], sizes = [2, 32], strides = [1, 1]} : vector<2x256xf32> to vector<2x32xf32>
    %188 = arith.mulf %186, %187 : vector<2x32xf32>
    %189 = arith.addf %185, %188 : vector<2x32xf32>
    %190 = vector.extract_strided_slice %181 {offsets = [0, 160], sizes = [2, 32], strides = [1, 1]} : vector<2x256xf32> to vector<2x32xf32>
    %191 = vector.extract_strided_slice %146 {offsets = [0, 32], sizes = [2, 32], strides = [1, 1]} : vector<2x64xf32> to vector<2x32xf32>
    %192 = arith.mulf %190, %191 : vector<2x32xf32>
    %193 = vector.extract_strided_slice %181 {offsets = [0, 128], sizes = [2, 32], strides = [1, 1]} : vector<2x256xf32> to vector<2x32xf32>
    %194 = vector.extract_strided_slice %182 {offsets = [0, 192], sizes = [2, 32], strides = [1, 1]} : vector<2x256xf32> to vector<2x32xf32>
    %195 = arith.mulf %193, %194 : vector<2x32xf32>
    %196 = arith.addf %192, %195 : vector<2x32xf32>
    %197 = tpu.concatenate %189, %196 in 1 : vector<2x32xf32>, vector<2x32xf32> -> vector<2x64xf32>
    %198 = math.tanh %197 : vector<2x64xf32>
    %199 = vector.extract_strided_slice %181 {offsets = [0, 96], sizes = [2, 32], strides = [1, 1]} : vector<2x256xf32> to vector<2x32xf32>
    %200 = vector.extract_strided_slice %198 {offsets = [0, 0], sizes = [2, 32], strides = [1, 1]} : vector<2x64xf32> to vector<2x32xf32>
    %201 = arith.mulf %199, %200 : vector<2x32xf32>
    %202 = vector.extract_strided_slice %181 {offsets = [0, 224], sizes = [2, 32], strides = [1, 1]} : vector<2x256xf32> to vector<2x32xf32>
    %203 = vector.extract_strided_slice %198 {offsets = [0, 32], sizes = [2, 32], strides = [1, 1]} : vector<2x64xf32> to vector<2x32xf32>
    %204 = arith.mulf %202, %203 : vector<2x32xf32>
    %205 = arith.index_cast %c3_i32 : i32 to index
    %c0_57 = arith.constant 0 : index
    %c0_58 = arith.constant 0 : index
    %206 = vector.load %arg9[%205, %c0_57, %c0_58] : memref<8x2x32xf32, #tpu.memory_space<vmem>>, vector<1x2x32xf32>
    %207 = vector.shape_cast %206 : vector<1x2x32xf32> to vector<2x32xf32>
    %208 = vector.shape_cast %201 : vector<2x32xf32> to vector<1x2x32xf32>
    tpu.vector_store %arg9[%205, %c0_57, %c0_58], %208 {strides = array<i32>} : memref<8x2x32xf32, #tpu.memory_space<vmem>>, vector<1x2x32xf32>,
    %209 = arith.index_cast %163 : i32 to index
    %c0_59 = arith.constant 0 : index
    %c0_60 = arith.constant 0 : index
    %210 = vector.load %arg10[%209, %c0_59, %c0_60] : memref<8x2x32xf32, #tpu.memory_space<vmem>>, vector<1x2x32xf32>
    %211 = vector.shape_cast %210 : vector<1x2x32xf32> to vector<2x32xf32>
    %212 = vector.shape_cast %204 : vector<2x32xf32> to vector<1x2x32xf32>
    tpu.vector_store %arg10[%209, %c0_59, %c0_60], %212 {strides = array<i32>} : memref<8x2x32xf32, #tpu.memory_space<vmem>>, vector<1x2x32xf32>,
    %213 = tpu.concatenate %201, %204 in 1 : vector<2x32xf32>, vector<2x32xf32> -> vector<2x64xf32>
    %c4_i32 = arith.constant 4 : i32
    %c7_i32_61 = arith.constant 7 : i32
    %214 = arith.subi %c7_i32_61, %c4_i32 : i32
    %215 = arith.index_cast %c4_i32 : i32 to index
    %c0_62 = arith.constant 0 : index
    %c0_63 = arith.constant 0 : index
    %216 = vector.load %arg8[%215, %c0_62, %c0_63] : memref<8x2x256xf32, #tpu.memory_space<vmem>>, vector<1x2x256xf32>
    %217 = vector.shape_cast %216 : vector<1x2x256xf32> to vector<2x256xf32>
    %218 = vector.extract_strided_slice %217 {offsets = [0, 0], sizes = [2, 128], strides = [1, 1]} : vector<2x256xf32> to vector<2x128xf32>
    %219 = arith.index_cast %214 : i32 to index
    %c0_64 = arith.constant 0 : index
    %c0_65 = arith.constant 0 : index
    %220 = vector.load %arg8[%219, %c0_64, %c0_65] : memref<8x2x256xf32, #tpu.memory_space<vmem>>, vector<1x2x256xf32>
    %221 = vector.shape_cast %220 : vector<1x2x256xf32> to vector<2x256xf32>
    %222 = vector.extract_strided_slice %221 {offsets = [0, 128], sizes = [2, 128], strides = [1, 1]} : vector<2x256xf32> to vector<2x128xf32>
    %223 = tpu.concatenate %218, %222 in 1 : vector<2x128xf32>, vector<2x128xf32> -> vector<2x256xf32>
    %224 = arith.truncf %213 : vector<2x64xf32> to vector<2x64xbf16>
    %c0_66 = arith.constant 0 : index
    %c0_67 = arith.constant 0 : index
    %225 = vector.load %arg3[%c0_66, %c0_67] : memref<64x256xbf16, #tpu.memory_space<vmem>>, vector<64x256xbf16>
    %cst_68 = arith.constant dense<0.000000e+00> : vector<2x256xf32>
    %226 = tpu.matmul %224, %225, %cst_68 {dimension_numbers = #tpu.dot_dimension_numbers<[1], [0], [0], [1], [0, 0, 1, 1], [], []>} : vector<2x64xbf16>, vector<64x256xbf16>, vector<2x256xf32> -> vector<2x256xf32>
    %227 = arith.addf %223, %226 : vector<2x256xf32>
    %228 = arith.negf %227 : vector<2x256xf32>
    %229 = math.exp %228 : vector<2x256xf32>
    %cst_69 = arith.constant 1.000000e+00 : f32
    %230 = vector.broadcast %cst_69 : f32 to vector<2x256xf32>
    %231 = arith.addf %230, %229 : vector<2x256xf32>
    %232 = arith.divf %230, %231 : vector<2x256xf32>
    %233 = math.tanh %227 : vector<2x256xf32>
    %234 = vector.extract_strided_slice %232 {offsets = [0, 32], sizes = [2, 32], strides = [1, 1]} : vector<2x256xf32> to vector<2x32xf32>
    %235 = vector.extract_strided_slice %197 {offsets = [0, 0], sizes = [2, 32], strides = [1, 1]} : vector<2x64xf32> to vector<2x32xf32>
    %236 = arith.mulf %234, %235 : vector<2x32xf32>
    %237 = vector.extract_strided_slice %232 {offsets = [0, 0], sizes = [2, 32], strides = [1, 1]} : vector<2x256xf32> to vector<2x32xf32>
    %238 = vector.extract_strided_slice %233 {offsets = [0, 64], sizes = [2, 32], strides = [1, 1]} : vector<2x256xf32> to vector<2x32xf32>
    %239 = arith.mulf %237, %238 : vector<2x32xf32>
    %240 = arith.addf %236, %239 : vector<2x32xf32>
    %241 = vector.extract_strided_slice %232 {offsets = [0, 160], sizes = [2, 32], strides = [1, 1]} : vector<2x256xf32> to vector<2x32xf32>
    %242 = vector.extract_strided_slice %197 {offsets = [0, 32], sizes = [2, 32], strides = [1, 1]} : vector<2x64xf32> to vector<2x32xf32>
    %243 = arith.mulf %241, %242 : vector<2x32xf32>
    %244 = vector.extract_strided_slice %232 {offsets = [0, 128], sizes = [2, 32], strides = [1, 1]} : vector<2x256xf32> to vector<2x32xf32>
    %245 = vector.extract_strided_slice %233 {offsets = [0, 192], sizes = [2, 32], strides = [1, 1]} : vector<2x256xf32> to vector<2x32xf32>
    %246 = arith.mulf %244, %245 : vector<2x32xf32>
    %247 = arith.addf %243, %246 : vector<2x32xf32>
    %248 = tpu.concatenate %240, %247 in 1 : vector<2x32xf32>, vector<2x32xf32> -> vector<2x64xf32>
    %249 = math.tanh %248 : vector<2x64xf32>
    %250 = vector.extract_strided_slice %232 {offsets = [0, 96], sizes = [2, 32], strides = [1, 1]} : vector<2x256xf32> to vector<2x32xf32>
    %251 = vector.extract_strided_slice %249 {offsets = [0, 0], sizes = [2, 32], strides = [1, 1]} : vector<2x64xf32> to vector<2x32xf32>
    %252 = arith.mulf %250, %251 : vector<2x32xf32>
    %253 = vector.extract_strided_slice %232 {offsets = [0, 224], sizes = [2, 32], strides = [1, 1]} : vector<2x256xf32> to vector<2x32xf32>
    %254 = vector.extract_strided_slice %249 {offsets = [0, 32], sizes = [2, 32], strides = [1, 1]} : vector<2x64xf32> to vector<2x32xf32>
    %255 = arith.mulf %253, %254 : vector<2x32xf32>
    %256 = arith.index_cast %c4_i32 : i32 to index
    %c0_70 = arith.constant 0 : index
    %c0_71 = arith.constant 0 : index
    %257 = vector.load %arg9[%256, %c0_70, %c0_71] : memref<8x2x32xf32, #tpu.memory_space<vmem>>, vector<1x2x32xf32>
    %258 = vector.shape_cast %257 : vector<1x2x32xf32> to vector<2x32xf32>
    %259 = vector.shape_cast %252 : vector<2x32xf32> to vector<1x2x32xf32>
    tpu.vector_store %arg9[%256, %c0_70, %c0_71], %259 {strides = array<i32>} : memref<8x2x32xf32, #tpu.memory_space<vmem>>, vector<1x2x32xf32>,
    %260 = arith.index_cast %214 : i32 to index
    %c0_72 = arith.constant 0 : index
    %c0_73 = arith.constant 0 : index
    %261 = vector.load %arg10[%260, %c0_72, %c0_73] : memref<8x2x32xf32, #tpu.memory_space<vmem>>, vector<1x2x32xf32>
    %262 = vector.shape_cast %261 : vector<1x2x32xf32> to vector<2x32xf32>
    %263 = vector.shape_cast %255 : vector<2x32xf32> to vector<1x2x32xf32>
    tpu.vector_store %arg10[%260, %c0_72, %c0_73], %263 {strides = array<i32>} : memref<8x2x32xf32, #tpu.memory_space<vmem>>, vector<1x2x32xf32>,
    %264 = tpu.concatenate %252, %255 in 1 : vector<2x32xf32>, vector<2x32xf32> -> vector<2x64xf32>
    %c5_i32 = arith.constant 5 : i32
    %c7_i32_74 = arith.constant 7 : i32
    %265 = arith.subi %c7_i32_74, %c5_i32 : i32
    %266 = arith.index_cast %c5_i32 : i32 to index
    %c0_75 = arith.constant 0 : index
    %c0_76 = arith.constant 0 : index
    %267 = vector.load %arg8[%266, %c0_75, %c0_76] : memref<8x2x256xf32, #tpu.memory_space<vmem>>, vector<1x2x256xf32>
    %268 = vector.shape_cast %267 : vector<1x2x256xf32> to vector<2x256xf32>
    %269 = vector.extract_strided_slice %268 {offsets = [0, 0], sizes = [2, 128], strides = [1, 1]} : vector<2x256xf32> to vector<2x128xf32>
    %270 = arith.index_cast %265 : i32 to index
    %c0_77 = arith.constant 0 : index
    %c0_78 = arith.constant 0 : index
    %271 = vector.load %arg8[%270, %c0_77, %c0_78] : memref<8x2x256xf32, #tpu.memory_space<vmem>>, vector<1x2x256xf32>
    %272 = vector.shape_cast %271 : vector<1x2x256xf32> to vector<2x256xf32>
    %273 = vector.extract_strided_slice %272 {offsets = [0, 128], sizes = [2, 128], strides = [1, 1]} : vector<2x256xf32> to vector<2x128xf32>
    %274 = tpu.concatenate %269, %273 in 1 : vector<2x128xf32>, vector<2x128xf32> -> vector<2x256xf32>
    %275 = arith.truncf %264 : vector<2x64xf32> to vector<2x64xbf16>
    %c0_79 = arith.constant 0 : index
    %c0_80 = arith.constant 0 : index
    %276 = vector.load %arg3[%c0_79, %c0_80] : memref<64x256xbf16, #tpu.memory_space<vmem>>, vector<64x256xbf16>
    %cst_81 = arith.constant dense<0.000000e+00> : vector<2x256xf32>
    %277 = tpu.matmul %275, %276, %cst_81 {dimension_numbers = #tpu.dot_dimension_numbers<[1], [0], [0], [1], [0, 0, 1, 1], [], []>} : vector<2x64xbf16>, vector<64x256xbf16>, vector<2x256xf32> -> vector<2x256xf32>
    %278 = arith.addf %274, %277 : vector<2x256xf32>
    %279 = arith.negf %278 : vector<2x256xf32>
    %280 = math.exp %279 : vector<2x256xf32>
    %cst_82 = arith.constant 1.000000e+00 : f32
    %281 = vector.broadcast %cst_82 : f32 to vector<2x256xf32>
    %282 = arith.addf %281, %280 : vector<2x256xf32>
    %283 = arith.divf %281, %282 : vector<2x256xf32>
    %284 = math.tanh %278 : vector<2x256xf32>
    %285 = vector.extract_strided_slice %283 {offsets = [0, 32], sizes = [2, 32], strides = [1, 1]} : vector<2x256xf32> to vector<2x32xf32>
    %286 = vector.extract_strided_slice %248 {offsets = [0, 0], sizes = [2, 32], strides = [1, 1]} : vector<2x64xf32> to vector<2x32xf32>
    %287 = arith.mulf %285, %286 : vector<2x32xf32>
    %288 = vector.extract_strided_slice %283 {offsets = [0, 0], sizes = [2, 32], strides = [1, 1]} : vector<2x256xf32> to vector<2x32xf32>
    %289 = vector.extract_strided_slice %284 {offsets = [0, 64], sizes = [2, 32], strides = [1, 1]} : vector<2x256xf32> to vector<2x32xf32>
    %290 = arith.mulf %288, %289 : vector<2x32xf32>
    %291 = arith.addf %287, %290 : vector<2x32xf32>
    %292 = vector.extract_strided_slice %283 {offsets = [0, 160], sizes = [2, 32], strides = [1, 1]} : vector<2x256xf32> to vector<2x32xf32>
    %293 = vector.extract_strided_slice %248 {offsets = [0, 32], sizes = [2, 32], strides = [1, 1]} : vector<2x64xf32> to vector<2x32xf32>
    %294 = arith.mulf %292, %293 : vector<2x32xf32>
    %295 = vector.extract_strided_slice %283 {offsets = [0, 128], sizes = [2, 32], strides = [1, 1]} : vector<2x256xf32> to vector<2x32xf32>
    %296 = vector.extract_strided_slice %284 {offsets = [0, 192], sizes = [2, 32], strides = [1, 1]} : vector<2x256xf32> to vector<2x32xf32>
    %297 = arith.mulf %295, %296 : vector<2x32xf32>
    %298 = arith.addf %294, %297 : vector<2x32xf32>
    %299 = tpu.concatenate %291, %298 in 1 : vector<2x32xf32>, vector<2x32xf32> -> vector<2x64xf32>
    %300 = math.tanh %299 : vector<2x64xf32>
    %301 = vector.extract_strided_slice %283 {offsets = [0, 96], sizes = [2, 32], strides = [1, 1]} : vector<2x256xf32> to vector<2x32xf32>
    %302 = vector.extract_strided_slice %300 {offsets = [0, 0], sizes = [2, 32], strides = [1, 1]} : vector<2x64xf32> to vector<2x32xf32>
    %303 = arith.mulf %301, %302 : vector<2x32xf32>
    %304 = vector.extract_strided_slice %283 {offsets = [0, 224], sizes = [2, 32], strides = [1, 1]} : vector<2x256xf32> to vector<2x32xf32>
    %305 = vector.extract_strided_slice %300 {offsets = [0, 32], sizes = [2, 32], strides = [1, 1]} : vector<2x64xf32> to vector<2x32xf32>
    %306 = arith.mulf %304, %305 : vector<2x32xf32>
    %307 = arith.index_cast %c5_i32 : i32 to index
    %c0_83 = arith.constant 0 : index
    %c0_84 = arith.constant 0 : index
    %308 = vector.load %arg9[%307, %c0_83, %c0_84] : memref<8x2x32xf32, #tpu.memory_space<vmem>>, vector<1x2x32xf32>
    %309 = vector.shape_cast %308 : vector<1x2x32xf32> to vector<2x32xf32>
    %310 = vector.shape_cast %303 : vector<2x32xf32> to vector<1x2x32xf32>
    tpu.vector_store %arg9[%307, %c0_83, %c0_84], %310 {strides = array<i32>} : memref<8x2x32xf32, #tpu.memory_space<vmem>>, vector<1x2x32xf32>,
    %311 = arith.index_cast %265 : i32 to index
    %c0_85 = arith.constant 0 : index
    %c0_86 = arith.constant 0 : index
    %312 = vector.load %arg10[%311, %c0_85, %c0_86] : memref<8x2x32xf32, #tpu.memory_space<vmem>>, vector<1x2x32xf32>
    %313 = vector.shape_cast %312 : vector<1x2x32xf32> to vector<2x32xf32>
    %314 = vector.shape_cast %306 : vector<2x32xf32> to vector<1x2x32xf32>
    tpu.vector_store %arg10[%311, %c0_85, %c0_86], %314 {strides = array<i32>} : memref<8x2x32xf32, #tpu.memory_space<vmem>>, vector<1x2x32xf32>,
    %315 = tpu.concatenate %303, %306 in 1 : vector<2x32xf32>, vector<2x32xf32> -> vector<2x64xf32>
    %c6_i32 = arith.constant 6 : i32
    %c7_i32_87 = arith.constant 7 : i32
    %316 = arith.subi %c7_i32_87, %c6_i32 : i32
    %317 = arith.index_cast %c6_i32 : i32 to index
    %c0_88 = arith.constant 0 : index
    %c0_89 = arith.constant 0 : index
    %318 = vector.load %arg8[%317, %c0_88, %c0_89] : memref<8x2x256xf32, #tpu.memory_space<vmem>>, vector<1x2x256xf32>
    %319 = vector.shape_cast %318 : vector<1x2x256xf32> to vector<2x256xf32>
    %320 = vector.extract_strided_slice %319 {offsets = [0, 0], sizes = [2, 128], strides = [1, 1]} : vector<2x256xf32> to vector<2x128xf32>
    %321 = arith.index_cast %316 : i32 to index
    %c0_90 = arith.constant 0 : index
    %c0_91 = arith.constant 0 : index
    %322 = vector.load %arg8[%321, %c0_90, %c0_91] : memref<8x2x256xf32, #tpu.memory_space<vmem>>, vector<1x2x256xf32>
    %323 = vector.shape_cast %322 : vector<1x2x256xf32> to vector<2x256xf32>
    %324 = vector.extract_strided_slice %323 {offsets = [0, 128], sizes = [2, 128], strides = [1, 1]} : vector<2x256xf32> to vector<2x128xf32>
    %325 = tpu.concatenate %320, %324 in 1 : vector<2x128xf32>, vector<2x128xf32> -> vector<2x256xf32>
    %326 = arith.truncf %315 : vector<2x64xf32> to vector<2x64xbf16>
    %c0_92 = arith.constant 0 : index
    %c0_93 = arith.constant 0 : index
    %327 = vector.load %arg3[%c0_92, %c0_93] : memref<64x256xbf16, #tpu.memory_space<vmem>>, vector<64x256xbf16>
    %cst_94 = arith.constant dense<0.000000e+00> : vector<2x256xf32>
    %328 = tpu.matmul %326, %327, %cst_94 {dimension_numbers = #tpu.dot_dimension_numbers<[1], [0], [0], [1], [0, 0, 1, 1], [], []>} : vector<2x64xbf16>, vector<64x256xbf16>, vector<2x256xf32> -> vector<2x256xf32>
    %329 = arith.addf %325, %328 : vector<2x256xf32>
    %330 = arith.negf %329 : vector<2x256xf32>
    %331 = math.exp %330 : vector<2x256xf32>
    %cst_95 = arith.constant 1.000000e+00 : f32
    %332 = vector.broadcast %cst_95 : f32 to vector<2x256xf32>
    %333 = arith.addf %332, %331 : vector<2x256xf32>
    %334 = arith.divf %332, %333 : vector<2x256xf32>
    %335 = math.tanh %329 : vector<2x256xf32>
    %336 = vector.extract_strided_slice %334 {offsets = [0, 32], sizes = [2, 32], strides = [1, 1]} : vector<2x256xf32> to vector<2x32xf32>
    %337 = vector.extract_strided_slice %299 {offsets = [0, 0], sizes = [2, 32], strides = [1, 1]} : vector<2x64xf32> to vector<2x32xf32>
    %338 = arith.mulf %336, %337 : vector<2x32xf32>
    %339 = vector.extract_strided_slice %334 {offsets = [0, 0], sizes = [2, 32], strides = [1, 1]} : vector<2x256xf32> to vector<2x32xf32>
    %340 = vector.extract_strided_slice %335 {offsets = [0, 64], sizes = [2, 32], strides = [1, 1]} : vector<2x256xf32> to vector<2x32xf32>
    %341 = arith.mulf %339, %340 : vector<2x32xf32>
    %342 = arith.addf %338, %341 : vector<2x32xf32>
    %343 = vector.extract_strided_slice %334 {offsets = [0, 160], sizes = [2, 32], strides = [1, 1]} : vector<2x256xf32> to vector<2x32xf32>
    %344 = vector.extract_strided_slice %299 {offsets = [0, 32], sizes = [2, 32], strides = [1, 1]} : vector<2x64xf32> to vector<2x32xf32>
    %345 = arith.mulf %343, %344 : vector<2x32xf32>
    %346 = vector.extract_strided_slice %334 {offsets = [0, 128], sizes = [2, 32], strides = [1, 1]} : vector<2x256xf32> to vector<2x32xf32>
    %347 = vector.extract_strided_slice %335 {offsets = [0, 192], sizes = [2, 32], strides = [1, 1]} : vector<2x256xf32> to vector<2x32xf32>
    %348 = arith.mulf %346, %347 : vector<2x32xf32>
    %349 = arith.addf %345, %348 : vector<2x32xf32>
    %350 = tpu.concatenate %342, %349 in 1 : vector<2x32xf32>, vector<2x32xf32> -> vector<2x64xf32>
    %351 = math.tanh %350 : vector<2x64xf32>
    %352 = vector.extract_strided_slice %334 {offsets = [0, 96], sizes = [2, 32], strides = [1, 1]} : vector<2x256xf32> to vector<2x32xf32>
    %353 = vector.extract_strided_slice %351 {offsets = [0, 0], sizes = [2, 32], strides = [1, 1]} : vector<2x64xf32> to vector<2x32xf32>
    %354 = arith.mulf %352, %353 : vector<2x32xf32>
    %355 = vector.extract_strided_slice %334 {offsets = [0, 224], sizes = [2, 32], strides = [1, 1]} : vector<2x256xf32> to vector<2x32xf32>
    %356 = vector.extract_strided_slice %351 {offsets = [0, 32], sizes = [2, 32], strides = [1, 1]} : vector<2x64xf32> to vector<2x32xf32>
    %357 = arith.mulf %355, %356 : vector<2x32xf32>
    %358 = arith.index_cast %c6_i32 : i32 to index
    %c0_96 = arith.constant 0 : index
    %c0_97 = arith.constant 0 : index
    %359 = vector.load %arg9[%358, %c0_96, %c0_97] : memref<8x2x32xf32, #tpu.memory_space<vmem>>, vector<1x2x32xf32>
    %360 = vector.shape_cast %359 : vector<1x2x32xf32> to vector<2x32xf32>
    %361 = vector.shape_cast %354 : vector<2x32xf32> to vector<1x2x32xf32>
    tpu.vector_store %arg9[%358, %c0_96, %c0_97], %361 {strides = array<i32>} : memref<8x2x32xf32, #tpu.memory_space<vmem>>, vector<1x2x32xf32>,
    %362 = arith.index_cast %316 : i32 to index
    %c0_98 = arith.constant 0 : index
    %c0_99 = arith.constant 0 : index
    %363 = vector.load %arg10[%362, %c0_98, %c0_99] : memref<8x2x32xf32, #tpu.memory_space<vmem>>, vector<1x2x32xf32>
    %364 = vector.shape_cast %363 : vector<1x2x32xf32> to vector<2x32xf32>
    %365 = vector.shape_cast %357 : vector<2x32xf32> to vector<1x2x32xf32>
    tpu.vector_store %arg10[%362, %c0_98, %c0_99], %365 {strides = array<i32>} : memref<8x2x32xf32, #tpu.memory_space<vmem>>, vector<1x2x32xf32>,
    %366 = tpu.concatenate %354, %357 in 1 : vector<2x32xf32>, vector<2x32xf32> -> vector<2x64xf32>
    %c7_i32_100 = arith.constant 7 : i32
    %c7_i32_101 = arith.constant 7 : i32
    %367 = arith.subi %c7_i32_101, %c7_i32_100 : i32
    %368 = arith.index_cast %c7_i32_100 : i32 to index
    %c0_102 = arith.constant 0 : index
    %c0_103 = arith.constant 0 : index
    %369 = vector.load %arg8[%368, %c0_102, %c0_103] : memref<8x2x256xf32, #tpu.memory_space<vmem>>, vector<1x2x256xf32>
    %370 = vector.shape_cast %369 : vector<1x2x256xf32> to vector<2x256xf32>
    %371 = vector.extract_strided_slice %370 {offsets = [0, 0], sizes = [2, 128], strides = [1, 1]} : vector<2x256xf32> to vector<2x128xf32>
    %372 = arith.index_cast %367 : i32 to index
    %c0_104 = arith.constant 0 : index
    %c0_105 = arith.constant 0 : index
    %373 = vector.load %arg8[%372, %c0_104, %c0_105] : memref<8x2x256xf32, #tpu.memory_space<vmem>>, vector<1x2x256xf32>
    %374 = vector.shape_cast %373 : vector<1x2x256xf32> to vector<2x256xf32>
    %375 = vector.extract_strided_slice %374 {offsets = [0, 128], sizes = [2, 128], strides = [1, 1]} : vector<2x256xf32> to vector<2x128xf32>
    %376 = tpu.concatenate %371, %375 in 1 : vector<2x128xf32>, vector<2x128xf32> -> vector<2x256xf32>
    %377 = arith.truncf %366 : vector<2x64xf32> to vector<2x64xbf16>
    %c0_106 = arith.constant 0 : index
    %c0_107 = arith.constant 0 : index
    %378 = vector.load %arg3[%c0_106, %c0_107] : memref<64x256xbf16, #tpu.memory_space<vmem>>, vector<64x256xbf16>
    %cst_108 = arith.constant dense<0.000000e+00> : vector<2x256xf32>
    %379 = tpu.matmul %377, %378, %cst_108 {dimension_numbers = #tpu.dot_dimension_numbers<[1], [0], [0], [1], [0, 0, 1, 1], [], []>} : vector<2x64xbf16>, vector<64x256xbf16>, vector<2x256xf32> -> vector<2x256xf32>
    %380 = arith.addf %376, %379 : vector<2x256xf32>
    %381 = arith.negf %380 : vector<2x256xf32>
    %382 = math.exp %381 : vector<2x256xf32>
    %cst_109 = arith.constant 1.000000e+00 : f32
    %383 = vector.broadcast %cst_109 : f32 to vector<2x256xf32>
    %384 = arith.addf %383, %382 : vector<2x256xf32>
    %385 = arith.divf %383, %384 : vector<2x256xf32>
    %386 = math.tanh %380 : vector<2x256xf32>
    %387 = vector.extract_strided_slice %385 {offsets = [0, 32], sizes = [2, 32], strides = [1, 1]} : vector<2x256xf32> to vector<2x32xf32>
    %388 = vector.extract_strided_slice %350 {offsets = [0, 0], sizes = [2, 32], strides = [1, 1]} : vector<2x64xf32> to vector<2x32xf32>
    %389 = arith.mulf %387, %388 : vector<2x32xf32>
    %390 = vector.extract_strided_slice %385 {offsets = [0, 0], sizes = [2, 32], strides = [1, 1]} : vector<2x256xf32> to vector<2x32xf32>
    %391 = vector.extract_strided_slice %386 {offsets = [0, 64], sizes = [2, 32], strides = [1, 1]} : vector<2x256xf32> to vector<2x32xf32>
    %392 = arith.mulf %390, %391 : vector<2x32xf32>
    %393 = arith.addf %389, %392 : vector<2x32xf32>
    %394 = vector.extract_strided_slice %385 {offsets = [0, 160], sizes = [2, 32], strides = [1, 1]} : vector<2x256xf32> to vector<2x32xf32>
    %395 = vector.extract_strided_slice %350 {offsets = [0, 32], sizes = [2, 32], strides = [1, 1]} : vector<2x64xf32> to vector<2x32xf32>
    %396 = arith.mulf %394, %395 : vector<2x32xf32>
    %397 = vector.extract_strided_slice %385 {offsets = [0, 128], sizes = [2, 32], strides = [1, 1]} : vector<2x256xf32> to vector<2x32xf32>
    %398 = vector.extract_strided_slice %386 {offsets = [0, 192], sizes = [2, 32], strides = [1, 1]} : vector<2x256xf32> to vector<2x32xf32>
    %399 = arith.mulf %397, %398 : vector<2x32xf32>
    %400 = arith.addf %396, %399 : vector<2x32xf32>
    %401 = tpu.concatenate %393, %400 in 1 : vector<2x32xf32>, vector<2x32xf32> -> vector<2x64xf32>
    %402 = math.tanh %401 : vector<2x64xf32>
    %403 = vector.extract_strided_slice %385 {offsets = [0, 96], sizes = [2, 32], strides = [1, 1]} : vector<2x256xf32> to vector<2x32xf32>
    %404 = vector.extract_strided_slice %402 {offsets = [0, 0], sizes = [2, 32], strides = [1, 1]} : vector<2x64xf32> to vector<2x32xf32>
    %405 = arith.mulf %403, %404 : vector<2x32xf32>
    %406 = vector.extract_strided_slice %385 {offsets = [0, 224], sizes = [2, 32], strides = [1, 1]} : vector<2x256xf32> to vector<2x32xf32>
    %407 = vector.extract_strided_slice %402 {offsets = [0, 32], sizes = [2, 32], strides = [1, 1]} : vector<2x64xf32> to vector<2x32xf32>
    %408 = arith.mulf %406, %407 : vector<2x32xf32>
    %409 = arith.index_cast %c7_i32_100 : i32 to index
    %c0_110 = arith.constant 0 : index
    %c0_111 = arith.constant 0 : index
    %410 = vector.load %arg9[%409, %c0_110, %c0_111] : memref<8x2x32xf32, #tpu.memory_space<vmem>>, vector<1x2x32xf32>
    %411 = vector.shape_cast %410 : vector<1x2x32xf32> to vector<2x32xf32>
    %412 = vector.shape_cast %405 : vector<2x32xf32> to vector<1x2x32xf32>
    tpu.vector_store %arg9[%409, %c0_110, %c0_111], %412 {strides = array<i32>} : memref<8x2x32xf32, #tpu.memory_space<vmem>>, vector<1x2x32xf32>,
    %413 = arith.index_cast %367 : i32 to index
    %c0_112 = arith.constant 0 : index
    %c0_113 = arith.constant 0 : index
    %414 = vector.load %arg10[%413, %c0_112, %c0_113] : memref<8x2x32xf32, #tpu.memory_space<vmem>>, vector<1x2x32xf32>
    %415 = vector.shape_cast %414 : vector<1x2x32xf32> to vector<2x32xf32>
    %416 = vector.shape_cast %408 : vector<2x32xf32> to vector<1x2x32xf32>
    tpu.vector_store %arg10[%413, %c0_112, %c0_113], %416 {strides = array<i32>} : memref<8x2x32xf32, #tpu.memory_space<vmem>>, vector<1x2x32xf32>,
    %417 = tpu.concatenate %405, %408 in 1 : vector<2x32xf32>, vector<2x32xf32> -> vector<2x64xf32>
    %c8_i32 = arith.constant 8 : i32
    %c0_114 = arith.constant 0 : index
    %c0_115 = arith.constant 0 : index
    %c0_116 = arith.constant 0 : index
    %418 = vector.load %arg9[%c0_114, %c0_115, %c0_116] : memref<8x2x32xf32, #tpu.memory_space<vmem>>, vector<8x2x32xf32>
    %419 = vector.shape_cast %418 : vector<8x2x32xf32> to vector<16x32xf32>
    %420 = arith.truncf %419 : vector<16x32xf32> to vector<16x32xbf16>
    %c0_117 = arith.constant 0 : index
    %c0_118 = arith.constant 0 : index
    %c0_119 = arith.constant 0 : index
    %421 = vector.load %arg10[%c0_117, %c0_118, %c0_119] : memref<8x2x32xf32, #tpu.memory_space<vmem>>, vector<8x2x32xf32>
    %422 = vector.shape_cast %421 : vector<8x2x32xf32> to vector<16x32xf32>
    %423 = arith.truncf %422 : vector<16x32xf32> to vector<16x32xbf16>
    %c0_120 = arith.constant 0 : index
    %c0_121 = arith.constant 0 : index
    %424 = vector.load %arg5[%c0_120, %c0_121] : memref<64x16xbf16, #tpu.memory_space<vmem>>, vector<32x16xbf16>
    %cst_122 = arith.constant dense<0.000000e+00> : vector<16x16xf32>
    %425 = tpu.matmul %420, %424, %cst_122 {dimension_numbers = #tpu.dot_dimension_numbers<[1], [0], [0], [1], [0, 0, 1, 1], [], []>} : vector<16x32xbf16>, vector<32x16xbf16>, vector<16x16xf32> -> vector<16x16xf32>
    %c32 = arith.constant 32 : index
    %c0_123 = arith.constant 0 : index
    %426 = vector.load %arg5[%c32, %c0_123] : memref<64x16xbf16, #tpu.memory_space<vmem>>, vector<32x16xbf16>
    %cst_124 = arith.constant dense<0.000000e+00> : vector<16x16xf32>
    %427 = tpu.matmul %423, %426, %cst_124 {dimension_numbers = #tpu.dot_dimension_numbers<[1], [0], [0], [1], [0, 0, 1, 1], [], []>} : vector<16x32xbf16>, vector<32x16xbf16>, vector<16x16xf32> -> vector<16x16xf32>
    %428 = arith.addf %425, %427 : vector<16x16xf32>
    %c0_125 = arith.constant 0 : index
    %c0_126 = arith.constant 0 : index
    %429 = vector.load %arg6[%c0_125, %c0_126] : memref<1x16xf32, #tpu.memory_space<vmem>>, vector<1x16xf32>
    %430 = vector.broadcast %429 : vector<1x16xf32> to vector<16x16xf32>
    %431 = arith.addf %428, %430 : vector<16x16xf32>
    %432 = vector.shape_cast %431 : vector<16x16xf32> to vector<8x2x16xf32>
    %c0_127 = arith.constant 0 : index
    %c0_128 = arith.constant 0 : index
    %c0_129 = arith.constant 0 : index
    %433 = vector.load %arg7[%c0_127, %c0_128, %c0_129] : memref<8x2x16xf32, #tpu.memory_space<vmem>>, vector<8x2x16xf32>
    tpu.vector_store %arg7[%c0_127, %c0_128, %c0_129], %432 {strides = array<i32>} : memref<8x2x16xf32, #tpu.memory_space<vmem>>, vector<8x2x16xf32>,
    return
  }
  func.func @transform_0(%arg0: i32) -> (i32, i32, i32) {
    %c0_i32 = arith.constant 0 : i32
    %c0_i32_0 = arith.constant 0 : i32
    %c0_i32_1 = arith.constant 0 : i32
    %c0_i32_2 = arith.constant 0 : i32
    return %c0_i32, %c0_i32_0, %c0_i32_1 : i32, i32, i32
  }
  func.func @transform_1(%arg0: i32) -> (i32, i32) {
    %c0_i32 = arith.constant 0 : i32
    %c0_i32_0 = arith.constant 0 : i32
    %c0_i32_1 = arith.constant 0 : i32
    return %c0_i32, %c0_i32_0 : i32, i32
  }
  func.func @transform_2(%arg0: i32) -> (i32, i32) {
    %c0_i32 = arith.constant 0 : i32
    %c0_i32_0 = arith.constant 0 : i32
    %c0_i32_1 = arith.constant 0 : i32
    return %c0_i32, %c0_i32_0 : i32, i32
  }
  func.func @transform_3(%arg0: i32) -> (i32, i32) {
    %c0_i32 = arith.constant 0 : i32
    %c0_i32_0 = arith.constant 0 : i32
    %c0_i32_1 = arith.constant 0 : i32
    return %c0_i32, %c0_i32_0 : i32, i32
  }
  func.func @transform_4(%arg0: i32) -> (i32, i32) {
    %c0_i32 = arith.constant 0 : i32
    %c0_i32_0 = arith.constant 0 : i32
    %c0_i32_1 = arith.constant 0 : i32
    return %c0_i32, %c0_i32_0 : i32, i32
  }
  func.func @transform_5(%arg0: i32) -> (i32, i32) {
    %c0_i32 = arith.constant 0 : i32
    %c0_i32_0 = arith.constant 0 : i32
    %c0_i32_1 = arith.constant 0 : i32
    return %c0_i32, %c0_i32_0 : i32, i32
  }
  func.func @transform_6(%arg0: i32) -> (i32, i32, i32) {
    %c0_i32 = arith.constant 0 : i32
    %c0_i32_0 = arith.constant 0 : i32
    %c0_i32_1 = arith.constant 0 : i32
    %c0_i32_2 = arith.constant 0 : i32
    return %c0_i32, %c0_i32_0, %c0_i32_1 : i32, i32, i32
  }
}

</mosaic_0001>

<llo_original>
// kernel: lstm_decoder_forward.1
$region0: #{lstm_decoder_forward.1}
  #allocation0 [shape = 'u32[]', space=smem, size = 0x4, offset = 0x4, fixed_abs, tag = 'smem constant byte address 0x4 - core index']
  #allocation1 [shape = 'u32[72,128]{1,0:T(1,128)}', space=vmem, size = 0x9000, scoped, tag = 'internal scratch']
  #allocation2 [shape = 'f32[8,2,256]{2,1,0:T(2,128)}', space=vmem, size = 0x4000, scoped, tag = 'scratch operand']
  #allocation3 [shape = 'f32[8,2,32]{2,1,0:T(2,128)}', space=vmem, size = 0x2000, scoped, tag = 'scratch operand']
  #allocation4 [shape = 'f32[8,2,32]{2,1,0:T(2,128)}', space=vmem, size = 0x2000, scoped, tag = 'scratch operand']
  %s0 = inlined_call_operand.vmem [shape: bf16[8,2,32], index: 0, kind: input, shape index: {}]
  %s1 = inlined_call_operand.vmem [shape: bf16[32,256], index: 1, kind: input, shape index: {}]
  %s2 = inlined_call_operand.vmem [shape: bf16[64,256], index: 2, kind: input, shape index: {}]
  %s3 = inlined_call_operand.vmem [shape: f32[1,256], index: 3, kind: input, shape index: {}]
  %s4 = inlined_call_operand.vmem [shape: bf16[64,16], index: 4, kind: input, shape index: {}]
  %s5 = inlined_call_operand.vmem [shape: f32[1,16], index: 5, kind: input, shape index: {}]
  %s6 = inlined_call_operand.hbm [shape: f32[8,2,16], index: 6, kind: output, shape index: {}]
  %s7 = sld [smem:[#allocation0]]
  $region34: #{lstm_decoder_forward.1} parent=0
    _
  %s9 = ssub.s32 1, %s7
  %s10 = scalar_select 0, %s9, %s7
  $region1: #{lstm_decoder_forward.1} parent=0
    #allocation5 [shape = 'u8[8192]{0}', space=vmem, size = 0x2000, scoped, tag = 'output window, operand 0, single buffered']
    #allocation6 [shape = 's32[1]{0}', space=sflag, size = 0x4, scoped, tag = 'scoped memory for lstm_decoder_forward.1']
    %11 = vsyncpa [#allocation6], 0
    // Predicated region
    $region2: #{lstm_decoder_forward.1} parent=1 // pred_check
      _
    $region3: #{lstm_decoder_forward.1} parent=1 // pred_check_branch
      %13 = sbr.rel (0) target = $region5
    $region4: #{lstm_decoder_forward.1} parent=1 // pred_region
      _
    $region5: #{lstm_decoder_forward.1} parent=1 // pred_fallthru
      _
    // Predicated region
    $region6: #{lstm_decoder_forward.1} parent=1 // pred_check
      _
    $region7: #{lstm_decoder_forward.1} parent=1 // pred_check_branch
      %15 = sbr.rel (0) target = $region9
    $region8: #{lstm_decoder_forward.1} parent=1 // pred_region
      _
    $region9: #{lstm_decoder_forward.1} parent=1 // pred_fallthru
      _
    // Predicated region
    $region10: #{lstm_decoder_forward.1} parent=1 // pred_check
      _
    $region11: #{lstm_decoder_forward.1} parent=1 // pred_check_branch
      %17 = sbr.rel (0) target = $region13
    $region12: #{lstm_decoder_forward.1} parent=1 // pred_region
      _
    $region13: #{lstm_decoder_forward.1} parent=1 // pred_fallthru
      _
    // Predicated region
    $region14: #{lstm_decoder_forward.1} parent=1 // pred_check
      _
    $region15: #{lstm_decoder_forward.1} parent=1 // pred_check_branch
      %19 = sbr.rel (0) target = $region17
    $region16: #{lstm_decoder_forward.1} parent=1 // pred_region
      _
    $region17: #{lstm_decoder_forward.1} parent=1 // pred_fallthru
      _
    // Predicated region
    $region18: #{lstm_decoder_forward.1} parent=1 // pred_check
      _
    $region19: #{lstm_decoder_forward.1} parent=1 // pred_check_branch
      %21 = sbr.rel (0) target = $region21
    $region20: #{lstm_decoder_forward.1} parent=1 // pred_region
      _
    $region21: #{lstm_decoder_forward.1} parent=1 // pred_fallthru
      _
    // Predicated region
    $region22: #{lstm_decoder_forward.1} parent=1 // pred_check
      _
    $region23: #{lstm_decoder_forward.1} parent=1 // pred_check_branch
      %23 = sbr.rel (0) target = $region25
    $region24: #{lstm_decoder_forward.1} parent=1 // pred_region
      _
    $region25: #{lstm_decoder_forward.1} parent=1 // pred_fallthru
      _
    %v25 = vld [vmem:[%s0] sm:$0x1]
    %v26 = vld [vmem:[%s0 + $0x1] sm:$0x1]
    %v27 = vld [vmem:[%s0 + $0x2] sm:$0x1]
    %v28 = vld [vmem:[%s0 + $0x3] sm:$0x1]
    %v29 = vld [vmem:[%s0 + $0x4] sm:$0x1]
    %v30 = vld [vmem:[%s0 + $0x5] sm:$0x1]
    %v31 = vld [vmem:[%s0 + $0x6] sm:$0x1]
    %v32 = vld [vmem:[%s0 + $0x7] sm:$0x1]
    %v33 = vld [vmem:[%s1] sm:$0xff]
    %v34 = vld [vmem:[%s1 + $0x8] sm:$0xff]
    %v35 = vld [vmem:[%s1 + $0x10] sm:$0xff]
    %v36 = vld [vmem:[%s1 + $0x18] sm:$0xff]
    %v37 = vld [vmem:[%s3] sm:$0x3]
    %v39 = vperm.slane %v37, 0
    %v40 = vperm.slane %v37, 1
    %44 = vst [vmem:[#allocation1] ss:$9 sm:$0xff] %v25
    %s46 = scalar_lea.vmem [#allocation1], 1
    %47 = vst [vmem:[%s46] ss:$9 sm:$0xff] %v26
    %s49 = scalar_lea.vmem [#allocation1], 2
    %50 = vst [vmem:[%s49] ss:$9 sm:$0xff] %v27
    %s52 = scalar_lea.vmem [#allocation1], 3
    %53 = vst [vmem:[%s52] ss:$9 sm:$0xff] %v28
    %s55 = scalar_lea.vmem [#allocation1], 4
    %56 = vst [vmem:[%s55] ss:$9 sm:$0xff] %v29
    %s58 = scalar_lea.vmem [#allocation1], 5
    %59 = vst [vmem:[%s58] ss:$9 sm:$0xff] %v30
    %s61 = scalar_lea.vmem [#allocation1], 6
    %62 = vst [vmem:[%s61] ss:$9 sm:$0xff] %v31
    %s64 = scalar_lea.vmem [#allocation1], 7
    %65 = vst [vmem:[%s64] ss:$9 sm:$0xff] %v32
    %v66 = vld [vmem:[#allocation1] sm:$0xff]
    %v71 = vunpack.c.l.b16 %v33
    %v72 = vunpack.c.h.b16 %v33
    %v73 = vunpack.c.l.b16 %v34
    %v74 = vunpack.c.h.b16 %v34
    %v75 = vunpack.c.l.b16 %v35
    %v76 = vunpack.c.h.b16 %v35
    %v77 = vunpack.c.l.b16 %v36
    %v78 = vunpack.c.h.b16 %v36
    %v79 = vpack.c.b16 %v73, %v71
    %v80 = vpack.c.b16 %v74, %v72
    %v81 = vpack.c.b16 %v77, %v75
    %v82 = vpack.c.b16 %v78, %v76
    %vm87 = vcmask 261120
    %v88 = vsel %vm87, %v66, 0
    %90 = vmatpush.bf16.msra.mxu0 0
    %91 = vmatpush.bf16.msra.mxu0 0
    %92 = vmatpush.bf16.msra.mxu0 0
    %93 = vmatpush.bf16.msra.mxu0 0
    %94 = vmatpush.bf16.msra.mxu0 0
    %95 = vmatpush.bf16.msra.mxu0 0
    %96 = vmatpush.bf16.msra.mxu0 %v81
    %97 = vmatpush.bf16.msra.mxu0 %v79
    %98 = vmatmul.bf16.gmra.mxu0 %v88
    %v99 = vpop.f32.mrf.mxu0
    %v100 = vadd.f32 %v39, %v99
    %v101 = vpop.f32.mrf.mxu0
    %v102 = vadd.f32 %v39, %v101
    %103 = vdwg.mxu0
    %104 = vmatpush.bf16.msra.mxu0 0
    %105 = vmatpush.bf16.msra.mxu0 0
    %106 = vmatpush.bf16.msra.mxu0 0
    %107 = vmatpush.bf16.msra.mxu0 0
    %108 = vmatpush.bf16.msra.mxu0 0
    %109 = vmatpush.bf16.msra.mxu0 0
    %110 = vmatpush.bf16.msra.mxu0 %v82
    %111 = vmatpush.bf16.msra.mxu0 %v80
    %112 = vmatmul.bf16.gmra.mxu0 %v88
    %v113 = vpop.f32.mrf.mxu0
    %v114 = vadd.f32 %v40, %v113
    %v115 = vpop.f32.mrf.mxu0
    %v116 = vadd.f32 %v40, %v115
    %117 = vdwg.mxu0
    %v122 = vrot.slane %v114, 6
    %v123 = vrot.slane %v116, 6
    %vm124 = vcmask 1041408
    %v125 = vsel %vm124, %v100, %v122
    %vm126 = vcmask 1043458
    %v127 = vsel %vm126, %v100, %v122
    %v128 = vrot.slane %v127, 2
    %vm129 = vcmask 1045508
    %v130 = vsel %vm129, %v100, %v122
    %v131 = vrot.slane %v130, 4
    %vm132 = vcmask 1045504
    %v133 = vsel %vm132, %v122, %v100
    %v134 = vrot.slane %v133, 6
    %v135 = vsel %vm124, %v102, %v123
    %v136 = vsel %vm126, %v102, %v123
    %v137 = vrot.slane %v136, 2
    %v138 = vsel %vm129, %v102, %v123
    %v139 = vrot.slane %v138, 4
    %v140 = vsel %vm132, %v123, %v102
    %v141 = vrot.slane %v140, 6
    %150 = vst [vmem:[#allocation2] sm:$0xf] %v125
    %151 = vst [vmem:[#allocation2 + $0x4] sm:$0xf] %v128
    %152 = vst [vmem:[#allocation2 + $0x8] sm:$0xf] %v131
    %153 = vst [vmem:[#allocation2 + $0xc] sm:$0xf] %v134
    %154 = vst [vmem:[#allocation2 + $0x10] sm:$0xf] %v135
    %155 = vst [vmem:[#allocation2 + $0x14] sm:$0xf] %v137
    %156 = vst [vmem:[#allocation2 + $0x18] sm:$0xf] %v139
    %157 = vst [vmem:[#allocation2 + $0x1c] sm:$0xf] %v141
    %v158 = vld [vmem:[#allocation2] sm:$0xf]
    %s159 = scalar_lea.vmem [#allocation2], 28
    %v160 = vld [vmem:[%s159] sm:$0xf]
    %162 = vst [vmem:[#allocation1] ss:$4 sm:$0xff] %v160
    %v163 = vld.sshfl [vmem:[#allocation1 + $0x8] sm:$0xff pattern:$0x73625140]
    %v165 = vld [vmem:[%s2] sm:$0xff]
    %v166 = vld [vmem:[%s2 + $0x8] sm:$0xff]
    %v167 = vld [vmem:[%s2 + $0x10] sm:$0xff]
    %v168 = vld [vmem:[%s2 + $0x18] sm:$0xff]
    %v169 = vld [vmem:[%s2 + $0x20] sm:$0xff]
    %v170 = vld [vmem:[%s2 + $0x28] sm:$0xff]
    %v171 = vld [vmem:[%s2 + $0x30] sm:$0xff]
    %v172 = vld [vmem:[%s2 + $0x38] sm:$0xff]
    %v181 = vunpack.c.l.b16 %v165
    %v182 = vunpack.c.h.b16 %v165
    %v183 = vunpack.c.l.b16 %v166
    %v184 = vunpack.c.h.b16 %v166
    %v185 = vunpack.c.l.b16 %v167
    %v186 = vunpack.c.h.b16 %v167
    %v187 = vunpack.c.l.b16 %v168
    %v188 = vunpack.c.h.b16 %v168
    %v189 = vunpack.c.l.b16 %v169
    %v190 = vunpack.c.h.b16 %v169
    %v191 = vunpack.c.l.b16 %v170
    %v192 = vunpack.c.h.b16 %v170
    %v193 = vunpack.c.l.b16 %v171
    %v194 = vunpack.c.h.b16 %v171
    %v195 = vunpack.c.l.b16 %v172
    %v196 = vunpack.c.h.b16 %v172
    %v197 = vpack.c.b16 %v183, %v181
    %v198 = vpack.c.b16 %v184, %v182
    %v199 = vpack.c.b16 %v187, %v185
    %v200 = vpack.c.b16 %v188, %v186
    %v201 = vpack.c.b16 %v191, %v189
    %v202 = vpack.c.b16 %v192, %v190
    %v203 = vpack.c.b16 %v195, %v193
    %v204 = vpack.c.b16 %v196, %v194
    %vm213 = vcmask 523264
    %v215 = vsel %vm213, 0, 0
    %217 = vmatpush.bf16.msra.mxu0 0
    %218 = vmatpush.bf16.msra.mxu0 0
    %219 = vmatpush.bf16.msra.mxu0 0
    %220 = vmatpush.bf16.msra.mxu0 0
    %221 = vmatpush.bf16.msra.mxu0 %v203
    %222 = vmatpush.bf16.msra.mxu0 %v201
    %223 = vmatpush.bf16.msra.mxu0 %v199
    %224 = vmatpush.bf16.msra.mxu0 %v197
    %225 = vmatmul.bf16.gmra.mxu0 %v215
    %v226 = vpop.f32.mrf.mxu0
    %v227 = vadd.f32 0.0, %v226
    %v228 = vpop.f32.mrf.mxu0
    %229 = vdwg.mxu0
    %230 = vmatpush.bf16.msra.mxu0 0
    %231 = vmatpush.bf16.msra.mxu0 0
    %232 = vmatpush.bf16.msra.mxu0 0
    %233 = vmatpush.bf16.msra.mxu0 0
    %234 = vmatpush.bf16.msra.mxu0 %v204
    %235 = vmatpush.bf16.msra.mxu0 %v202
    %236 = vmatpush.bf16.msra.mxu0 %v200
    %237 = vmatpush.bf16.msra.mxu0 %v198
    %238 = vmatmul.bf16.gmra.mxu0 %v215
    %v239 = vpop.f32.mrf.mxu0
    %v240 = vadd.f32 0.0, %v239
    %v241 = vpop.f32.mrf.mxu0
    %242 = vdwg.mxu0
    %v243 = vadd.f32 %v158, %v227
    %v244 = vadd.f32 %v163, %v240
    %v245 = vxor.u32 %v243, 2147483648
    %v246 = vxor.u32 %v244, 2147483648
    %v247 = vmul.f32 %v245, 1.442695
    %v248 = vpow.pop %v247
    %v249 = vmul.f32 %v246, 1.442695
    %v250 = vpow.pop %v249
    %v251 = vadd.f32 %v248, 1.0
    %v252 = vadd.f32 %v250, 1.0
    %v253 = vrcp.pop %v251
    %v254 = vmul.f32 %v251, %v253
    %v255 = vsub.f32 1.0, %v254
    %v256 = vmul.f32 %v253, %v255
    %v257 = vadd.f32 %v253, %v256
    %vm258 = vweird.f32 %v251
    %vm259 = vweird.f32 %v253
    %vm260 = vmor %vm258, %vm259
    %v261 = vsel %vm260, %v253, %v257
    %v262 = vand.u32 2147483647, %v251
    %vm263 = vcmp.eq.f32.partialorder %v262, 8.507059e+37
    %v264 = vand.u32 %v251, 2147483648
    %v265 = vor.u32 1.1754944e-38, %v264
    %v266 = vsel %vm263, %v265, %v261
    %v267 = vmul.f32 1.0, %v266
    %v268 = vrcp.pop %v252
    %v269 = vmul.f32 %v252, %v268
    %v270 = vsub.f32 1.0, %v269
    %v271 = vmul.f32 %v268, %v270
    %v272 = vadd.f32 %v268, %v271
    %vm273 = vweird.f32 %v252
    %vm274 = vweird.f32 %v268
    %vm275 = vmor %vm273, %vm274
    %v276 = vsel %vm275, %v268, %v272
    %v277 = vand.u32 2147483647, %v252
    %vm278 = vcmp.eq.f32.partialorder %v277, 8.507059e+37
    %v279 = vand.u32 %v252, 2147483648
    %v280 = vor.u32 1.1754944e-38, %v279
    %v281 = vsel %vm278, %v280, %v276
    %v282 = vmul.f32 1.0, %v281
    %v283 = vtanh.pop %v243
    %v284 = vtanh.pop %v244
    %v285 = vmul.f32 %v267, 0.0
    %287 = vrot.lane.b32.xlu0 %v283, 64
    %v288 = vpop.permute.xlu0 %287
    %v290 = vmul.f32 %v267, %v288
    %292 = vrot.lane.b32.xlu0 %v290, 32
    %v293 = vpop.permute.xlu0 %292
    %v295 = vadd.f32 %v285, %v293
    %v296 = vmul.f32 %v282, 0.0
    %298 = vrot.lane.b32.xlu0 %v284, 64
    %v299 = vpop.permute.xlu0 %298
    %v301 = vmul.f32 %v282, %v299
    %303 = vrot.lane.b32.xlu0 %v301, 32
    %v304 = vpop.permute.xlu0 %303
    %v306 = vadd.f32 %v296, %v304
    %308 = vrot.lane.b32.xlu0 %v295, 96
    %v309 = vpop.permute.xlu0 %308
    %v311 = vsel %vm87, %v309, %v306
    %v312 = vtanh.pop %v311
    %314 = vrot.lane.b32.xlu0 %v312, 96
    %v315 = vpop.permute.xlu0 %314
    %v317 = vmul.f32 %v267, %v315
    %318 = vrot.lane.b32.xlu0 %v312, 64
    %v319 = vpop.permute.xlu0 %318
    %v321 = vmul.f32 %v282, %v319
    %323 = vrot.lane.b32.xlu0 %v317, 32
    %v324 = vpop.permute.xlu0 %323
    %vm326 = vcmask 254976
    %327 = vst.msk [vmem:[#allocation3] sm:$0x3] %vm326, %v324
    %329 = vrot.lane.b32.xlu0 %v321, 32
    %v330 = vpop.permute.xlu0 %329
    %s332 = scalar_lea.vmem [#allocation4], 14
    %333 = vst.msk [vmem:[%s332] sm:$0x3] %vm326, %v330
    %334 = vrot.lane.b32.xlu0 %v321, 64
    %v335 = vpop.permute.xlu0 %334
    %v337 = vsel %vm87, %v324, %v335
    %s338 = scalar_lea.vmem [#allocation2], 4
    %v339 = vld [vmem:[%s338] sm:$0xf]
    %s340 = scalar_lea.vmem [#allocation2], 24
    %v341 = vld [vmem:[%s340] sm:$0xf]
    %343 = vst [vmem:[#allocation1] ss:$4 sm:$0xff] %v341
    %v344 = vld.sshfl [vmem:[#allocation1 + $0x8] sm:$0xff pattern:$0x73625140]
    %v346 = vpack.c.bf16 %v337, %v337
    %v347 = vld [vmem:[%s2] sm:$0xff]
    %v348 = vld [vmem:[%s2 + $0x8] sm:$0xff]
    %v349 = vld [vmem:[%s2 + $0x10] sm:$0xff]
    %v350 = vld [vmem:[%s2 + $0x18] sm:$0xff]
    %v351 = vld [vmem:[%s2 + $0x20] sm:$0xff]
    %v352 = vld [vmem:[%s2 + $0x28] sm:$0xff]
    %v353 = vld [vmem:[%s2 + $0x30] sm:$0xff]
    %v354 = vld [vmem:[%s2 + $0x38] sm:$0xff]
    %v363 = vunpack.c.l.b16 %v347
    %v364 = vunpack.c.h.b16 %v347
    %v365 = vunpack.c.l.b16 %v348
    %v366 = vunpack.c.h.b16 %v348
    %v367 = vunpack.c.l.b16 %v349
    %v368 = vunpack.c.h.b16 %v349
    %v369 = vunpack.c.l.b16 %v350
    %v370 = vunpack.c.h.b16 %v350
    %v371 = vunpack.c.l.b16 %v351
    %v372 = vunpack.c.h.b16 %v351
    %v373 = vunpack.c.l.b16 %v352
    %v374 = vunpack.c.h.b16 %v352
    %v375 = vunpack.c.l.b16 %v353
    %v376 = vunpack.c.h.b16 %v353
    %v377 = vunpack.c.l.b16 %v354
    %v378 = vunpack.c.h.b16 %v354
    %v379 = vpack.c.b16 %v365, %v363
    %v380 = vpack.c.b16 %v366, %v364
    %v381 = vpack.c.b16 %v369, %v367
    %v382 = vpack.c.b16 %v370, %v368
    %v383 = vpack.c.b16 %v373, %v371
    %v384 = vpack.c.b16 %v374, %v372
    %v385 = vpack.c.b16 %v377, %v375
    %v386 = vpack.c.b16 %v378, %v376
    %v396 = vsel %vm213, %v346, 0
    %398 = vmatpush.bf16.msra.mxu0 0
    %399 = vmatpush.bf16.msra.mxu0 0
    %400 = vmatpush.bf16.msra.mxu0 0
    %401 = vmatpush.bf16.msra.mxu0 0
    %402 = vmatpush.bf16.msra.mxu0 %v385
    %403 = vmatpush.bf16.msra.mxu0 %v383
    %404 = vmatpush.bf16.msra.mxu0 %v381
    %405 = vmatpush.bf16.msra.mxu0 %v379
    %406 = vmatmul.bf16.gmra.mxu0 %v396
    %v407 = vpop.f32.mrf.mxu0
    %v408 = vadd.f32 0.0, %v407
    %v409 = vpop.f32.mrf.mxu0
    %410 = vdwg.mxu0
    %411 = vmatpush.bf16.msra.mxu0 0
    %412 = vmatpush.bf16.msra.mxu0 0
    %413 = vmatpush.bf16.msra.mxu0 0
    %414 = vmatpush.bf16.msra.mxu0 0
    %415 = vmatpush.bf16.msra.mxu0 %v386
    %416 = vmatpush.bf16.msra.mxu0 %v384
    %417 = vmatpush.bf16.msra.mxu0 %v382
    %418 = vmatpush.bf16.msra.mxu0 %v380
    %419 = vmatmul.bf16.gmra.mxu0 %v396
    %v420 = vpop.f32.mrf.mxu0
    %v421 = vadd.f32 0.0, %v420
    %v422 = vpop.f32.mrf.mxu0
    %423 = vdwg.mxu0
    %v424 = vadd.f32 %v339, %v408
    %v425 = vadd.f32 %v344, %v421
    %v426 = vxor.u32 %v424, 2147483648
    %v427 = vxor.u32 %v425, 2147483648
    %v428 = vmul.f32 %v426, 1.442695
    %v429 = vpow.pop %v428
    %v430 = vmul.f32 %v427, 1.442695
    %v431 = vpow.pop %v430
    %v432 = vadd.f32 %v429, 1.0
    %v433 = vadd.f32 %v431, 1.0
    %v434 = vrcp.pop %v432
    %v435 = vmul.f32 %v432, %v434
    %v436 = vsub.f32 1.0, %v435
    %v437 = vmul.f32 %v434, %v436
    %v438 = vadd.f32 %v434, %v437
    %vm439 = vweird.f32 %v432
    %vm440 = vweird.f32 %v434
    %vm441 = vmor %vm439, %vm440
    %v442 = vsel %vm441, %v434, %v438
    %v443 = vand.u32 2147483647, %v432
    %vm444 = vcmp.eq.f32.partialorder %v443, 8.507059e+37
    %v445 = vand.u32 %v432, 2147483648
    %v446 = vor.u32 1.1754944e-38, %v445
    %v447 = vsel %vm444, %v446, %v442
    %v448 = vmul.f32 1.0, %v447
    %v449 = vrcp.pop %v433
    %v450 = vmul.f32 %v433, %v449
    %v451 = vsub.f32 1.0, %v450
    %v452 = vmul.f32 %v449, %v451
    %v453 = vadd.f32 %v449, %v452
    %vm454 = vweird.f32 %v433
    %vm455 = vweird.f32 %v449
    %vm456 = vmor %vm454, %vm455
    %v457 = vsel %vm456, %v449, %v453
    %v458 = vand.u32 2147483647, %v433
    %vm459 = vcmp.eq.f32.partialorder %v458, 8.507059e+37
    %v460 = vand.u32 %v433, 2147483648
    %v461 = vor.u32 1.1754944e-38, %v460
    %v462 = vsel %vm459, %v461, %v457
    %v463 = vmul.f32 1.0, %v462
    %v464 = vtanh.pop %v424
    %v465 = vtanh.pop %v425
    %467 = vrot.lane.b32.xlu0 %v311, 32
    %v468 = vpop.permute.xlu0 %467
    %v470 = vmul.f32 %v448, %v468
    %472 = vrot.lane.b32.xlu0 %v464, 64
    %v473 = vpop.permute.xlu0 %472
    %v475 = vmul.f32 %v448, %v473
    %477 = vrot.lane.b32.xlu0 %v475, 32
    %v478 = vpop.permute.xlu0 %477
    %v480 = vadd.f32 %v470, %v478
    %v481 = vmul.f32 %v463, %v311
    %483 = vrot.lane.b32.xlu0 %v465, 64
    %v484 = vpop.permute.xlu0 %483
    %v486 = vmul.f32 %v463, %v484
    %488 = vrot.lane.b32.xlu0 %v486, 32
    %v489 = vpop.permute.xlu0 %488
    %v491 = vadd.f32 %v481, %v489
    %493 = vrot.lane.b32.xlu0 %v480, 96
    %v494 = vpop.permute.xlu0 %493
    %v496 = vsel %vm87, %v494, %v491
    %v497 = vtanh.pop %v496
    %499 = vrot.lane.b32.xlu0 %v497, 96
    %v500 = vpop.permute.xlu0 %499
    %v502 = vmul.f32 %v448, %v500
    %503 = vrot.lane.b32.xlu0 %v497, 64
    %v504 = vpop.permute.xlu0 %503
    %v506 = vmul.f32 %v463, %v504
    %508 = vrot.lane.b32.xlu0 %v502, 32
    %v509 = vpop.permute.xlu0 %508
    %s511 = scalar_lea.vmem [#allocation3], 2
    %512 = vst.msk [vmem:[%s511] sm:$0x3] %vm326, %v509
    %514 = vrot.lane.b32.xlu0 %v506, 32
    %v515 = vpop.permute.xlu0 %514
    %s517 = scalar_lea.vmem [#allocation4], 12
    %518 = vst.msk [vmem:[%s517] sm:$0x3] %vm326, %v515
    %519 = vrot.lane.b32.xlu0 %v506, 64
    %v520 = vpop.permute.xlu0 %519
    %v522 = vsel %vm87, %v509, %v520
    %s523 = scalar_lea.vmem [#allocation2], 8
    %v524 = vld [vmem:[%s523] sm:$0xf]
    %s525 = scalar_lea.vmem [#allocation2], 20
    %v526 = vld [vmem:[%s525] sm:$0xf]
    %528 = vst [vmem:[#allocation1] ss:$4 sm:$0xff] %v526
    %v529 = vld.sshfl [vmem:[#allocation1 + $0x8] sm:$0xff pattern:$0x73625140]
    %v531 = vpack.c.bf16 %v522, %v522
    %v532 = vld [vmem:[%s2] sm:$0xff]
    %v533 = vld [vmem:[%s2 + $0x8] sm:$0xff]
    %v534 = vld [vmem:[%s2 + $0x10] sm:$0xff]
    %v535 = vld [vmem:[%s2 + $0x18] sm:$0xff]
    %v536 = vld [vmem:[%s2 + $0x20] sm:$0xff]
    %v537 = vld [vmem:[%s2 + $0x28] sm:$0xff]
    %v538 = vld [vmem:[%s2 + $0x30] sm:$0xff]
    %v539 = vld [vmem:[%s2 + $0x38] sm:$0xff]
    %v548 = vunpack.c.l.b16 %v532
    %v549 = vunpack.c.h.b16 %v532
    %v550 = vunpack.c.l.b16 %v533
    %v551 = vunpack.c.h.b16 %v533
    %v552 = vunpack.c.l.b16 %v534
    %v553 = vunpack.c.h.b16 %v534
    %v554 = vunpack.c.l.b16 %v535
    %v555 = vunpack.c.h.b16 %v535
    %v556 = vunpack.c.l.b16 %v536
    %v557 = vunpack.c.h.b16 %v536
    %v558 = vunpack.c.l.b16 %v537
    %v559 = vunpack.c.h.b16 %v537
    %v560 = vunpack.c.l.b16 %v538
    %v561 = vunpack.c.h.b16 %v538
    %v562 = vunpack.c.l.b16 %v539
    %v563 = vunpack.c.h.b16 %v539
    %v564 = vpack.c.b16 %v550, %v548
    %v565 = vpack.c.b16 %v551, %v549
    %v566 = vpack.c.b16 %v554, %v552
    %v567 = vpack.c.b16 %v555, %v553
    %v568 = vpack.c.b16 %v558, %v556
    %v569 = vpack.c.b16 %v559, %v557
    %v570 = vpack.c.b16 %v562, %v560
    %v571 = vpack.c.b16 %v563, %v561
    %v581 = vsel %vm213, %v531, 0
    %583 = vmatpush.bf16.msra.mxu0 0
    %584 = vmatpush.bf16.msra.mxu0 0
    %585 = vmatpush.bf16.msra.mxu0 0
    %586 = vmatpush.bf16.msra.mxu0 0
    %587 = vmatpush.bf16.msra.mxu0 %v570
    %588 = vmatpush.bf16.msra.mxu0 %v568
    %589 = vmatpush.bf16.msra.mxu0 %v566
    %590 = vmatpush.bf16.msra.mxu0 %v564
    %591 = vmatmul.bf16.gmra.mxu0 %v581
    %v592 = vpop.f32.mrf.mxu0
    %v593 = vadd.f32 0.0, %v592
    %v594 = vpop.f32.mrf.mxu0
    %595 = vdwg.mxu0
    %596 = vmatpush.bf16.msra.mxu0 0
    %597 = vmatpush.bf16.msra.mxu0 0
    %598 = vmatpush.bf16.msra.mxu0 0
    %599 = vmatpush.bf16.msra.mxu0 0
    %600 = vmatpush.bf16.msra.mxu0 %v571
    %601 = vmatpush.bf16.msra.mxu0 %v569
    %602 = vmatpush.bf16.msra.mxu0 %v567
    %603 = vmatpush.bf16.msra.mxu0 %v565
    %604 = vmatmul.bf16.gmra.mxu0 %v581
    %v605 = vpop.f32.mrf.mxu0
    %v606 = vadd.f32 0.0, %v605
    %v607 = vpop.f32.mrf.mxu0
    %608 = vdwg.mxu0
    %v609 = vadd.f32 %v524, %v593
    %v610 = vadd.f32 %v529, %v606
    %v611 = vxor.u32 %v609, 2147483648
    %v612 = vxor.u32 %v610, 2147483648
    %v613 = vmul.f32 %v611, 1.442695
    %v614 = vpow.pop %v613
    %v615 = vmul.f32 %v612, 1.442695
    %v616 = vpow.pop %v615
    %v617 = vadd.f32 %v614, 1.0
    %v618 = vadd.f32 %v616, 1.0
    %v619 = vrcp.pop %v617
    %v620 = vmul.f32 %v617, %v619
    %v621 = vsub.f32 1.0, %v620
    %v622 = vmul.f32 %v619, %v621
    %v623 = vadd.f32 %v619, %v622
    %vm624 = vweird.f32 %v617
    %vm625 = vweird.f32 %v619
    %vm626 = vmor %vm624, %vm625
    %v627 = vsel %vm626, %v619, %v623
    %v628 = vand.u32 2147483647, %v617
    %vm629 = vcmp.eq.f32.partialorder %v628, 8.507059e+37
    %v630 = vand.u32 %v617, 2147483648
    %v631 = vor.u32 1.1754944e-38, %v630
    %v632 = vsel %vm629, %v631, %v627
    %v633 = vmul.f32 1.0, %v632
    %v634 = vrcp.pop %v618
    %v635 = vmul.f32 %v618, %v634
    %v636 = vsub.f32 1.0, %v635
    %v637 = vmul.f32 %v634, %v636
    %v638 = vadd.f32 %v634, %v637
    %vm639 = vweird.f32 %v618
    %vm640 = vweird.f32 %v634
    %vm641 = vmor %vm639, %vm640
    %v642 = vsel %vm641, %v634, %v638
    %v643 = vand.u32 2147483647, %v618
    %vm644 = vcmp.eq.f32.partialorder %v643, 8.507059e+37
    %v645 = vand.u32 %v618, 2147483648
    %v646 = vor.u32 1.1754944e-38, %v645
    %v647 = vsel %vm644, %v646, %v642
    %v648 = vmul.f32 1.0, %v647
    %v649 = vtanh.pop %v609
    %v650 = vtanh.pop %v610
    %652 = vrot.lane.b32.xlu0 %v496, 32
    %v653 = vpop.permute.xlu0 %652
    %v655 = vmul.f32 %v633, %v653
    %657 = vrot.lane.b32.xlu0 %v649, 64
    %v658 = vpop.permute.xlu0 %657
    %v660 = vmul.f32 %v633, %v658
    %662 = vrot.lane.b32.xlu0 %v660, 32
    %v663 = vpop.permute.xlu0 %662
    %v665 = vadd.f32 %v655, %v663
    %v666 = vmul.f32 %v648, %v496
    %668 = vrot.lane.b32.xlu0 %v650, 64
    %v669 = vpop.permute.xlu0 %668
    %v671 = vmul.f32 %v648, %v669
    %673 = vrot.lane.b32.xlu0 %v671, 32
    %v674 = vpop.permute.xlu0 %673
    %v676 = vadd.f32 %v666, %v674
    %678 = vrot.lane.b32.xlu0 %v665, 96
    %v679 = vpop.permute.xlu0 %678
    %v681 = vsel %vm87, %v679, %v676
    %v682 = vtanh.pop %v681
    %684 = vrot.lane.b32.xlu0 %v682, 96
    %v685 = vpop.permute.xlu0 %684
    %v687 = vmul.f32 %v633, %v685
    %688 = vrot.lane.b32.xlu0 %v682, 64
    %v689 = vpop.permute.xlu0 %688
    %v691 = vmul.f32 %v648, %v689
    %693 = vrot.lane.b32.xlu0 %v687, 32
    %v694 = vpop.permute.xlu0 %693
    %s696 = scalar_lea.vmem [#allocation3], 4
    %697 = vst.msk [vmem:[%s696] sm:$0x3] %vm326, %v694
    %699 = vrot.lane.b32.xlu0 %v691, 32
    %v700 = vpop.permute.xlu0 %699
    %s702 = scalar_lea.vmem [#allocation4], 10
    %703 = vst.msk [vmem:[%s702] sm:$0x3] %vm326, %v700
    %704 = vrot.lane.b32.xlu0 %v691, 64
    %v705 = vpop.permute.xlu0 %704
    %v707 = vsel %vm87, %v694, %v705
    %s708 = scalar_lea.vmem [#allocation2], 12
    %v709 = vld [vmem:[%s708] sm:$0xf]
    %s710 = scalar_lea.vmem [#allocation2], 16
    %v711 = vld [vmem:[%s710] sm:$0xf]
    %713 = vst [vmem:[#allocation1] ss:$4 sm:$0xff] %v711
    %v714 = vld.sshfl [vmem:[#allocation1 + $0x8] sm:$0xff pattern:$0x73625140]
    %v716 = vpack.c.bf16 %v707, %v707
    %v717 = vld [vmem:[%s2] sm:$0xff]
    %v718 = vld [vmem:[%s2 + $0x8] sm:$0xff]
    %v719 = vld [vmem:[%s2 + $0x10] sm:$0xff]
    %v720 = vld [vmem:[%s2 + $0x18] sm:$0xff]
    %v721 = vld [vmem:[%s2 + $0x20] sm:$0xff]
    %v722 = vld [vmem:[%s2 + $0x28] sm:$0xff]
    %v723 = vld [vmem:[%s2 + $0x30] sm:$0xff]
    %v724 = vld [vmem:[%s2 + $0x38] sm:$0xff]
    %v733 = vunpack.c.l.b16 %v717
    %v734 = vunpack.c.h.b16 %v717
    %v735 = vunpack.c.l.b16 %v718
    %v736 = vunpack.c.h.b16 %v718
    %v737 = vunpack.c.l.b16 %v719
    %v738 = vunpack.c.h.b16 %v719
    %v739 = vunpack.c.l.b16 %v720
    %v740 = vunpack.c.h.b16 %v720
    %v741 = vunpack.c.l.b16 %v721
    %v742 = vunpack.c.h.b16 %v721
    %v743 = vunpack.c.l.b16 %v722
    %v744 = vunpack.c.h.b16 %v722
    %v745 = vunpack.c.l.b16 %v723
    %v746 = vunpack.c.h.b16 %v723
    %v747 = vunpack.c.l.b16 %v724
    %v748 = vunpack.c.h.b16 %v724
    %v749 = vpack.c.b16 %v735, %v733
    %v750 = vpack.c.b16 %v736, %v734
    %v751 = vpack.c.b16 %v739, %v737
    %v752 = vpack.c.b16 %v740, %v738
    %v753 = vpack.c.b16 %v743, %v741
    %v754 = vpack.c.b16 %v744, %v742
    %v755 = vpack.c.b16 %v747, %v745
    %v756 = vpack.c.b16 %v748, %v746
    %v766 = vsel %vm213, %v716, 0
    %768 = vmatpush.bf16.msra.mxu0 0
    %769 = vmatpush.bf16.msra.mxu0 0
    %770 = vmatpush.bf16.msra.mxu0 0
    %771 = vmatpush.bf16.msra.mxu0 0
    %772 = vmatpush.bf16.msra.mxu0 %v755
    %773 = vmatpush.bf16.msra.mxu0 %v753
    %774 = vmatpush.bf16.msra.mxu0 %v751
    %775 = vmatpush.bf16.msra.mxu0 %v749
    %776 = vmatmul.bf16.gmra.mxu0 %v766
    %v777 = vpop.f32.mrf.mxu0
    %v778 = vadd.f32 0.0, %v777
    %v779 = vpop.f32.mrf.mxu0
    %780 = vdwg.mxu0
    %781 = vmatpush.bf16.msra.mxu0 0
    %782 = vmatpush.bf16.msra.mxu0 0
    %783 = vmatpush.bf16.msra.mxu0 0
    %784 = vmatpush.bf16.msra.mxu0 0
    %785 = vmatpush.bf16.msra.mxu0 %v756
    %786 = vmatpush.bf16.msra.mxu0 %v754
    %787 = vmatpush.bf16.msra.mxu0 %v752
    %788 = vmatpush.bf16.msra.mxu0 %v750
    %789 = vmatmul.bf16.gmra.mxu0 %v766
    %v790 = vpop.f32.mrf.mxu0
    %v791 = vadd.f32 0.0, %v790
    %v792 = vpop.f32.mrf.mxu0
    %793 = vdwg.mxu0
    %v794 = vadd.f32 %v709, %v778
    %v795 = vadd.f32 %v714, %v791
    %v796 = vxor.u32 %v794, 2147483648
    %v797 = vxor.u32 %v795, 2147483648
    %v798 = vmul.f32 %v796, 1.442695
    %v799 = vpow.pop %v798
    %v800 = vmul.f32 %v797, 1.442695
    %v801 = vpow.pop %v800
    %v802 = vadd.f32 %v799, 1.0
    %v803 = vadd.f32 %v801, 1.0
    %v804 = vrcp.pop %v802
    %v805 = vmul.f32 %v802, %v804
    %v806 = vsub.f32 1.0, %v805
    %v807 = vmul.f32 %v804, %v806
    %v808 = vadd.f32 %v804, %v807
    %vm809 = vweird.f32 %v802
    %vm810 = vweird.f32 %v804
    %vm811 = vmor %vm809, %vm810
    %v812 = vsel %vm811, %v804, %v808
    %v813 = vand.u32 2147483647, %v802
    %vm814 = vcmp.eq.f32.partialorder %v813, 8.507059e+37
    %v815 = vand.u32 %v802, 2147483648
    %v816 = vor.u32 1.1754944e-38, %v815
    %v817 = vsel %vm814, %v816, %v812
    %v818 = vmul.f32 1.0, %v817
    %v819 = vrcp.pop %v803
    %v820 = vmul.f32 %v803, %v819
    %v821 = vsub.f32 1.0, %v820
    %v822 = vmul.f32 %v819, %v821
    %v823 = vadd.f32 %v819, %v822
    %vm824 = vweird.f32 %v803
    %vm825 = vweird.f32 %v819
    %vm826 = vmor %vm824, %vm825
    %v827 = vsel %vm826, %v819, %v823
    %v828 = vand.u32 2147483647, %v803
    %vm829 = vcmp.eq.f32.partialorder %v828, 8.507059e+37
    %v830 = vand.u32 %v803, 2147483648
    %v831 = vor.u32 1.1754944e-38, %v830
    %v832 = vsel %vm829, %v831, %v827
    %v833 = vmul.f32 1.0, %v832
    %v834 = vtanh.pop %v794
    %v835 = vtanh.pop %v795
    %837 = vrot.lane.b32.xlu0 %v681, 32
    %v838 = vpop.permute.xlu0 %837
    %v840 = vmul.f32 %v818, %v838
    %842 = vrot.lane.b32.xlu0 %v834, 64
    %v843 = vpop.permute.xlu0 %842
    %v845 = vmul.f32 %v818, %v843
    %847 = vrot.lane.b32.xlu0 %v845, 32
    %v848 = vpop.permute.xlu0 %847
    %v850 = vadd.f32 %v840, %v848
    %v851 = vmul.f32 %v833, %v681
    %853 = vrot.lane.b32.xlu0 %v835, 64
    %v854 = vpop.permute.xlu0 %853
    %v856 = vmul.f32 %v833, %v854
    %858 = vrot.lane.b32.xlu0 %v856, 32
    %v859 = vpop.permute.xlu0 %858
    %v861 = vadd.f32 %v851, %v859
    %863 = vrot.lane.b32.xlu0 %v850, 96
    %v864 = vpop.permute.xlu0 %863
    %v866 = vsel %vm87, %v864, %v861
    %v867 = vtanh.pop %v866
    %869 = vrot.lane.b32.xlu0 %v867, 96
    %v870 = vpop.permute.xlu0 %869
    %v872 = vmul.f32 %v818, %v870
    %873 = vrot.lane.b32.xlu0 %v867, 64
    %v874 = vpop.permute.xlu0 %873
    %v876 = vmul.f32 %v833, %v874
    %878 = vrot.lane.b32.xlu0 %v872, 32
    %v879 = vpop.permute.xlu0 %878
    %s881 = scalar_lea.vmem [#allocation3], 6
    %882 = vst.msk [vmem:[%s881] sm:$0x3] %vm326, %v879
    %884 = vrot.lane.b32.xlu0 %v876, 32
    %v885 = vpop.permute.xlu0 %884
    %s887 = scalar_lea.vmem [#allocation4], 8
    %888 = vst.msk [vmem:[%s887] sm:$0x3] %vm326, %v885
    %889 = vrot.lane.b32.xlu0 %v876, 64
    %v890 = vpop.permute.xlu0 %889
    %v892 = vsel %vm87, %v879, %v890
    %v893 = vld [vmem:[%s710] sm:$0xf]
    %v894 = vld [vmem:[%s708] sm:$0xf]
    %896 = vst [vmem:[#allocation1] ss:$4 sm:$0xff] %v894
    %v897 = vld.sshfl [vmem:[#allocation1 + $0x8] sm:$0xff pattern:$0x73625140]
    %v899 = vpack.c.bf16 %v892, %v892
    %v900 = vld [vmem:[%s2] sm:$0xff]
    %v901 = vld [vmem:[%s2 + $0x8] sm:$0xff]
    %v902 = vld [vmem:[%s2 + $0x10] sm:$0xff]
    %v903 = vld [vmem:[%s2 + $0x18] sm:$0xff]
    %v904 = vld [vmem:[%s2 + $0x20] sm:$0xff]
    %v905 = vld [vmem:[%s2 + $0x28] sm:$0xff]
    %v906 = vld [vmem:[%s2 + $0x30] sm:$0xff]
    %v907 = vld [vmem:[%s2 + $0x38] sm:$0xff]
    %v916 = vunpack.c.l.b16 %v900
    %v917 = vunpack.c.h.b16 %v900
    %v918 = vunpack.c.l.b16 %v901
    %v919 = vunpack.c.h.b16 %v901
    %v920 = vunpack.c.l.b16 %v902
    %v921 = vunpack.c.h.b16 %v902
    %v922 = vunpack.c.l.b16 %v903
    %v923 = vunpack.c.h.b16 %v903
    %v924 = vunpack.c.l.b16 %v904
    %v925 = vunpack.c.h.b16 %v904
    %v926 = vunpack.c.l.b16 %v905
    %v927 = vunpack.c.h.b16 %v905
    %v928 = vunpack.c.l.b16 %v906
    %v929 = vunpack.c.h.b16 %v906
    %v930 = vunpack.c.l.b16 %v907
    %v931 = vunpack.c.h.b16 %v907
    %v932 = vpack.c.b16 %v918, %v916
    %v933 = vpack.c.b16 %v919, %v917
    %v934 = vpack.c.b16 %v922, %v920
    %v935 = vpack.c.b16 %v923, %v921
    %v936 = vpack.c.b16 %v926, %v924
    %v937 = vpack.c.b16 %v927, %v925
    %v938 = vpack.c.b16 %v930, %v928
    %v939 = vpack.c.b16 %v931, %v929
    %v949 = vsel %vm213, %v899, 0
    %951 = vmatpush.bf16.msra.mxu0 0
    %952 = vmatpush.bf16.msra.mxu0 0
    %953 = vmatpush.bf16.msra.mxu0 0
    %954 = vmatpush.bf16.msra.mxu0 0
    %955 = vmatpush.bf16.msra.mxu0 %v938
    %956 = vmatpush.bf16.msra.mxu0 %v936
    %957 = vmatpush.bf16.msra.mxu0 %v934
    %958 = vmatpush.bf16.msra.mxu0 %v932
    %959 = vmatmul.bf16.gmra.mxu0 %v949
    %v960 = vpop.f32.mrf.mxu0
    %v961 = vadd.f32 0.0, %v960
    %v962 = vpop.f32.mrf.mxu0
    %963 = vdwg.mxu0
    %964 = vmatpush.bf16.msra.mxu0 0
    %965 = vmatpush.bf16.msra.mxu0 0
    %966 = vmatpush.bf16.msra.mxu0 0
    %967 = vmatpush.bf16.msra.mxu0 0
    %968 = vmatpush.bf16.msra.mxu0 %v939
    %969 = vmatpush.bf16.msra.mxu0 %v937
    %970 = vmatpush.bf16.msra.mxu0 %v935
    %971 = vmatpush.bf16.msra.mxu0 %v933
    %972 = vmatmul.bf16.gmra.mxu0 %v949
    %v973 = vpop.f32.mrf.mxu0
    %v974 = vadd.f32 0.0, %v973
    %v975 = vpop.f32.mrf.mxu0
    %976 = vdwg.mxu0
    %v977 = vadd.f32 %v893, %v961
    %v978 = vadd.f32 %v897, %v974
    %v979 = vxor.u32 %v977, 2147483648
    %v980 = vxor.u32 %v978, 2147483648
    %v981 = vmul.f32 %v979, 1.442695
    %v982 = vpow.pop %v981
    %v983 = vmul.f32 %v980, 1.442695
    %v984 = vpow.pop %v983
    %v985 = vadd.f32 %v982, 1.0
    %v986 = vadd.f32 %v984, 1.0
    %v987 = vrcp.pop %v985
    %v988 = vmul.f32 %v985, %v987
    %v989 = vsub.f32 1.0, %v988
    %v990 = vmul.f32 %v987, %v989
    %v991 = vadd.f32 %v987, %v990
    %vm992 = vweird.f32 %v985
    %vm993 = vweird.f32 %v987
    %vm994 = vmor %vm992, %vm993
    %v995 = vsel %vm994, %v987, %v991
    %v996 = vand.u32 2147483647, %v985
    %vm997 = vcmp.eq.f32.partialorder %v996, 8.507059e+37
    %v998 = vand.u32 %v985, 2147483648
    %v999 = vor.u32 1.1754944e-38, %v998
    %v1000 = vsel %vm997, %v999, %v995
    %v1001 = vmul.f32 1.0, %v1000
    %v1002 = vrcp.pop %v986
    %v1003 = vmul.f32 %v986, %v1002
    %v1004 = vsub.f32 1.0, %v1003
    %v1005 = vmul.f32 %v1002, %v1004
    %v1006 = vadd.f32 %v1002, %v1005
    %vm1007 = vweird.f32 %v986
    %vm1008 = vweird.f32 %v1002
    %vm1009 = vmor %vm1007, %vm1008
    %v1010 = vsel %vm1009, %v1002, %v1006
    %v1011 = vand.u32 2147483647, %v986
    %vm1012 = vcmp.eq.f32.partialorder %v1011, 8.507059e+37
    %v1013 = vand.u32 %v986, 2147483648
    %v1014 = vor.u32 1.1754944e-38, %v1013
    %v1015 = vsel %vm1012, %v1014, %v1010
    %v1016 = vmul.f32 1.0, %v1015
    %v1017 = vtanh.pop %v977
    %v1018 = vtanh.pop %v978
    %1020 = vrot.lane.b32.xlu0 %v866, 32
    %v1021 = vpop.permute.xlu0 %1020
    %v1023 = vmul.f32 %v1001, %v1021
    %1025 = vrot.lane.b32.xlu0 %v1017, 64
    %v1026 = vpop.permute.xlu0 %1025
    %v1028 = vmul.f32 %v1001, %v1026
    %1030 = vrot.lane.b32.xlu0 %v1028, 32
    %v1031 = vpop.permute.xlu0 %1030
    %v1033 = vadd.f32 %v1023, %v1031
    %v1034 = vmul.f32 %v1016, %v866
    %1036 = vrot.lane.b32.xlu0 %v1018, 64
    %v1037 = vpop.permute.xlu0 %1036
    %v1039 = vmul.f32 %v1016, %v1037
    %1041 = vrot.lane.b32.xlu0 %v1039, 32
    %v1042 = vpop.permute.xlu0 %1041
    %v1044 = vadd.f32 %v1034, %v1042
    %1046 = vrot.lane.b32.xlu0 %v1033, 96
    %v1047 = vpop.permute.xlu0 %1046
    %v1049 = vsel %vm87, %v1047, %v1044
    %v1050 = vtanh.pop %v1049
    %1052 = vrot.lane.b32.xlu0 %v1050, 96
    %v1053 = vpop.permute.xlu0 %1052
    %v1055 = vmul.f32 %v1001, %v1053
    %1056 = vrot.lane.b32.xlu0 %v1050, 64
    %v1057 = vpop.permute.xlu0 %1056
    %v1059 = vmul.f32 %v1016, %v1057
    %1061 = vrot.lane.b32.xlu0 %v1055, 32
    %v1062 = vpop.permute.xlu0 %1061
    %s1064 = scalar_lea.vmem [#allocation3], 8
    %1065 = vst.msk [vmem:[%s1064] sm:$0x3] %vm326, %v1062
    %1067 = vrot.lane.b32.xlu0 %v1059, 32
    %v1068 = vpop.permute.xlu0 %1067
    %s1070 = scalar_lea.vmem [#allocation4], 6
    %1071 = vst.msk [vmem:[%s1070] sm:$0x3] %vm326, %v1068
    %1072 = vrot.lane.b32.xlu0 %v1059, 64
    %v1073 = vpop.permute.xlu0 %1072
    %v1075 = vsel %vm87, %v1062, %v1073
    %v1076 = vld [vmem:[%s525] sm:$0xf]
    %v1077 = vld [vmem:[%s523] sm:$0xf]
    %1079 = vst [vmem:[#allocation1] ss:$4 sm:$0xff] %v1077
    %v1080 = vld.sshfl [vmem:[#allocation1 + $0x8] sm:$0xff pattern:$0x73625140]
    %v1082 = vpack.c.bf16 %v1075, %v1075
    %v1083 = vld [vmem:[%s2] sm:$0xff]
    %v1084 = vld [vmem:[%s2 + $0x8] sm:$0xff]
    %v1085 = vld [vmem:[%s2 + $0x10] sm:$0xff]
    %v1086 = vld [vmem:[%s2 + $0x18] sm:$0xff]
    %v1087 = vld [vmem:[%s2 + $0x20] sm:$0xff]
    %v1088 = vld [vmem:[%s2 + $0x28] sm:$0xff]
    %v1089 = vld [vmem:[%s2 + $0x30] sm:$0xff]
    %v1090 = vld [vmem:[%s2 + $0x38] sm:$0xff]
    %v1099 = vunpack.c.l.b16 %v1083
    %v1100 = vunpack.c.h.b16 %v1083
    %v1101 = vunpack.c.l.b16 %v1084
    %v1102 = vunpack.c.h.b16 %v1084
    %v1103 = vunpack.c.l.b16 %v1085
    %v1104 = vunpack.c.h.b16 %v1085
    %v1105 = vunpack.c.l.b16 %v1086
    %v1106 = vunpack.c.h.b16 %v1086
    %v1107 = vunpack.c.l.b16 %v1087
    %v1108 = vunpack.c.h.b16 %v1087
    %v1109 = vunpack.c.l.b16 %v1088
    %v1110 = vunpack.c.h.b16 %v1088
    %v1111 = vunpack.c.l.b16 %v1089
    %v1112 = vunpack.c.h.b16 %v1089
    %v1113 = vunpack.c.l.b16 %v1090
    %v1114 = vunpack.c.h.b16 %v1090
    %v1115 = vpack.c.b16 %v1101, %v1099
    %v1116 = vpack.c.b16 %v1102, %v1100
    %v1117 = vpack.c.b16 %v1105, %v1103
    %v1118 = vpack.c.b16 %v1106, %v1104
    %v1119 = vpack.c.b16 %v1109, %v1107
    %v1120 = vpack.c.b16 %v1110, %v1108
    %v1121 = vpack.c.b16 %v1113, %v1111
    %v1122 = vpack.c.b16 %v1114, %v1112
    %v1132 = vsel %vm213, %v1082, 0
    %1134 = vmatpush.bf16.msra.mxu0 0
    %1135 = vmatpush.bf16.msra.mxu0 0
    %1136 = vmatpush.bf16.msra.mxu0 0
    %1137 = vmatpush.bf16.msra.mxu0 0
    %1138 = vmatpush.bf16.msra.mxu0 %v1121
    %1139 = vmatpush.bf16.msra.mxu0 %v1119
    %1140 = vmatpush.bf16.msra.mxu0 %v1117
    %1141 = vmatpush.bf16.msra.mxu0 %v1115
    %1142 = vmatmul.bf16.gmra.mxu0 %v1132
    %v1143 = vpop.f32.mrf.mxu0
    %v1144 = vadd.f32 0.0, %v1143
    %v1145 = vpop.f32.mrf.mxu0
    %1146 = vdwg.mxu0
    %1147 = vmatpush.bf16.msra.mxu0 0
    %1148 = vmatpush.bf16.msra.mxu0 0
    %1149 = vmatpush.bf16.msra.mxu0 0
    %1150 = vmatpush.bf16.msra.mxu0 0
    %1151 = vmatpush.bf16.msra.mxu0 %v1122
    %1152 = vmatpush.bf16.msra.mxu0 %v1120
    %1153 = vmatpush.bf16.msra.mxu0 %v1118
    %1154 = vmatpush.bf16.msra.mxu0 %v1116
    %1155 = vmatmul.bf16.gmra.mxu0 %v1132
    %v1156 = vpop.f32.mrf.mxu0
    %v1157 = vadd.f32 0.0, %v1156
    %v1158 = vpop.f32.mrf.mxu0
    %1159 = vdwg.mxu0
    %v1160 = vadd.f32 %v1076, %v1144
    %v1161 = vadd.f32 %v1080, %v1157
    %v1162 = vxor.u32 %v1160, 2147483648
    %v1163 = vxor.u32 %v1161, 2147483648
    %v1164 = vmul.f32 %v1162, 1.442695
    %v1165 = vpow.pop %v1164
    %v1166 = vmul.f32 %v1163, 1.442695
    %v1167 = vpow.pop %v1166
    %v1168 = vadd.f32 %v1165, 1.0
    %v1169 = vadd.f32 %v1167, 1.0
    %v1170 = vrcp.pop %v1168
    %v1171 = vmul.f32 %v1168, %v1170
    %v1172 = vsub.f32 1.0, %v1171
    %v1173 = vmul.f32 %v1170, %v1172
    %v1174 = vadd.f32 %v1170, %v1173
    %vm1175 = vweird.f32 %v1168
    %vm1176 = vweird.f32 %v1170
    %vm1177 = vmor %vm1175, %vm1176
    %v1178 = vsel %vm1177, %v1170, %v1174
    %v1179 = vand.u32 2147483647, %v1168
    %vm1180 = vcmp.eq.f32.partialorder %v1179, 8.507059e+37
    %v1181 = vand.u32 %v1168, 2147483648
    %v1182 = vor.u32 1.1754944e-38, %v1181
    %v1183 = vsel %vm1180, %v1182, %v1178
    %v1184 = vmul.f32 1.0, %v1183
    %v1185 = vrcp.pop %v1169
    %v1186 = vmul.f32 %v1169, %v1185
    %v1187 = vsub.f32 1.0, %v1186
    %v1188 = vmul.f32 %v1185, %v1187
    %v1189 = vadd.f32 %v1185, %v1188
    %vm1190 = vweird.f32 %v1169
    %vm1191 = vweird.f32 %v1185
    %vm1192 = vmor %vm1190, %vm1191
    %v1193 = vsel %vm1192, %v1185, %v1189
    %v1194 = vand.u32 2147483647, %v1169
    %vm1195 = vcmp.eq.f32.partialorder %v1194, 8.507059e+37
    %v1196 = vand.u32 %v1169, 2147483648
    %v1197 = vor.u32 1.1754944e-38, %v1196
    %v1198 = vsel %vm1195, %v1197, %v1193
    %v1199 = vmul.f32 1.0, %v1198
    %v1200 = vtanh.pop %v1160
    %v1201 = vtanh.pop %v1161
    %1203 = vrot.lane.b32.xlu0 %v1049, 32
    %v1204 = vpop.permute.xlu0 %1203
    %v1206 = vmul.f32 %v1184, %v1204
    %1208 = vrot.lane.b32.xlu0 %v1200, 64
    %v1209 = vpop.permute.xlu0 %1208
    %v1211 = vmul.f32 %v1184, %v1209
    %1213 = vrot.lane.b32.xlu0 %v1211, 32
    %v1214 = vpop.permute.xlu0 %1213
    %v1216 = vadd.f32 %v1206, %v1214
    %v1217 = vmul.f32 %v1199, %v1049
    %1219 = vrot.lane.b32.xlu0 %v1201, 64
    %v1220 = vpop.permute.xlu0 %1219
    %v1222 = vmul.f32 %v1199, %v1220
    %1224 = vrot.lane.b32.xlu0 %v1222, 32
    %v1225 = vpop.permute.xlu0 %1224
    %v1227 = vadd.f32 %v1217, %v1225
    %1229 = vrot.lane.b32.xlu0 %v1216, 96
    %v1230 = vpop.permute.xlu0 %1229
    %v1232 = vsel %vm87, %v1230, %v1227
    %v1233 = vtanh.pop %v1232
    %1235 = vrot.lane.b32.xlu0 %v1233, 96
    %v1236 = vpop.permute.xlu0 %1235
    %v1238 = vmul.f32 %v1184, %v1236
    %1239 = vrot.lane.b32.xlu0 %v1233, 64
    %v1240 = vpop.permute.xlu0 %1239
    %v1242 = vmul.f32 %v1199, %v1240
    %1244 = vrot.lane.b32.xlu0 %v1238, 32
    %v1245 = vpop.permute.xlu0 %1244
    %s1247 = scalar_lea.vmem [#allocation3], 10
    %1248 = vst.msk [vmem:[%s1247] sm:$0x3] %vm326, %v1245
    %1250 = vrot.lane.b32.xlu0 %v1242, 32
    %v1251 = vpop.permute.xlu0 %1250
    %s1253 = scalar_lea.vmem [#allocation4], 4
    %1254 = vst.msk [vmem:[%s1253] sm:$0x3] %vm326, %v1251
    %1255 = vrot.lane.b32.xlu0 %v1242, 64
    %v1256 = vpop.permute.xlu0 %1255
    %v1258 = vsel %vm87, %v1245, %v1256
    %v1259 = vld [vmem:[%s340] sm:$0xf]
    %v1260 = vld [vmem:[%s338] sm:$0xf]
    %1262 = vst [vmem:[#allocation1] ss:$4 sm:$0xff] %v1260
    %v1263 = vld.sshfl [vmem:[#allocation1 + $0x8] sm:$0xff pattern:$0x73625140]
    %v1265 = vpack.c.bf16 %v1258, %v1258
    %v1266 = vld [vmem:[%s2] sm:$0xff]
    %v1267 = vld [vmem:[%s2 + $0x8] sm:$0xff]
    %v1268 = vld [vmem:[%s2 + $0x10] sm:$0xff]
    %v1269 = vld [vmem:[%s2 + $0x18] sm:$0xff]
    %v1270 = vld [vmem:[%s2 + $0x20] sm:$0xff]
    %v1271 = vld [vmem:[%s2 + $0x28] sm:$0xff]
    %v1272 = vld [vmem:[%s2 + $0x30] sm:$0xff]
    %v1273 = vld [vmem:[%s2 + $0x38] sm:$0xff]
    %v1282 = vunpack.c.l.b16 %v1266
    %v1283 = vunpack.c.h.b16 %v1266
    %v1284 = vunpack.c.l.b16 %v1267
    %v1285 = vunpack.c.h.b16 %v1267
    %v1286 = vunpack.c.l.b16 %v1268
    %v1287 = vunpack.c.h.b16 %v1268
    %v1288 = vunpack.c.l.b16 %v1269
    %v1289 = vunpack.c.h.b16 %v1269
    %v1290 = vunpack.c.l.b16 %v1270
    %v1291 = vunpack.c.h.b16 %v1270
    %v1292 = vunpack.c.l.b16 %v1271
    %v1293 = vunpack.c.h.b16 %v1271
    %v1294 = vunpack.c.l.b16 %v1272
    %v1295 = vunpack.c.h.b16 %v1272
    %v1296 = vunpack.c.l.b16 %v1273
    %v1297 = vunpack.c.h.b16 %v1273
    %v1298 = vpack.c.b16 %v1284, %v1282
    %v1299 = vpack.c.b16 %v1285, %v1283
    %v1300 = vpack.c.b16 %v1288, %v1286
    %v1301 = vpack.c.b16 %v1289, %v1287
    %v1302 = vpack.c.b16 %v1292, %v1290
    %v1303 = vpack.c.b16 %v1293, %v1291
    %v1304 = vpack.c.b16 %v1296, %v1294
    %v1305 = vpack.c.b16 %v1297, %v1295
    %v1315 = vsel %vm213, %v1265, 0
    %1317 = vmatpush.bf16.msra.mxu0 0
    %1318 = vmatpush.bf16.msra.mxu0 0
    %1319 = vmatpush.bf16.msra.mxu0 0
    %1320 = vmatpush.bf16.msra.mxu0 0
    %1321 = vmatpush.bf16.msra.mxu0 %v1304
    %1322 = vmatpush.bf16.msra.mxu0 %v1302
    %1323 = vmatpush.bf16.msra.mxu0 %v1300
    %1324 = vmatpush.bf16.msra.mxu0 %v1298
    %1325 = vmatmul.bf16.gmra.mxu0 %v1315
    %v1326 = vpop.f32.mrf.mxu0
    %v1327 = vadd.f32 0.0, %v1326
    %v1328 = vpop.f32.mrf.mxu0
    %1329 = vdwg.mxu0
    %1330 = vmatpush.bf16.msra.mxu0 0
    %1331 = vmatpush.bf16.msra.mxu0 0
    %1332 = vmatpush.bf16.msra.mxu0 0
    %1333 = vmatpush.bf16.msra.mxu0 0
    %1334 = vmatpush.bf16.msra.mxu0 %v1305
    %1335 = vmatpush.bf16.msra.mxu0 %v1303
    %1336 = vmatpush.bf16.msra.mxu0 %v1301
    %1337 = vmatpush.bf16.msra.mxu0 %v1299
    %1338 = vmatmul.bf16.gmra.mxu0 %v1315
    %v1339 = vpop.f32.mrf.mxu0
    %v1340 = vadd.f32 0.0, %v1339
    %v1341 = vpop.f32.mrf.mxu0
    %1342 = vdwg.mxu0
    %v1343 = vadd.f32 %v1259, %v1327
    %v1344 = vadd.f32 %v1263, %v1340
    %v1345 = vxor.u32 %v1343, 2147483648
    %v1346 = vxor.u32 %v1344, 2147483648
    %v1347 = vmul.f32 %v1345, 1.442695
    %v1348 = vpow.pop %v1347
    %v1349 = vmul.f32 %v1346, 1.442695
    %v1350 = vpow.pop %v1349
    %v1351 = vadd.f32 %v1348, 1.0
    %v1352 = vadd.f32 %v1350, 1.0
    %v1353 = vrcp.pop %v1351
    %v1354 = vmul.f32 %v1351, %v1353
    %v1355 = vsub.f32 1.0, %v1354
    %v1356 = vmul.f32 %v1353, %v1355
    %v1357 = vadd.f32 %v1353, %v1356
    %vm1358 = vweird.f32 %v1351
    %vm1359 = vweird.f32 %v1353
    %vm1360 = vmor %vm1358, %vm1359
    %v1361 = vsel %vm1360, %v1353, %v1357
    %v1362 = vand.u32 2147483647, %v1351
    %vm1363 = vcmp.eq.f32.partialorder %v1362, 8.507059e+37
    %v1364 = vand.u32 %v1351, 2147483648
    %v1365 = vor.u32 1.1754944e-38, %v1364
    %v1366 = vsel %vm1363, %v1365, %v1361
    %v1367 = vmul.f32 1.0, %v1366
    %v1368 = vrcp.pop %v1352
    %v1369 = vmul.f32 %v1352, %v1368
    %v1370 = vsub.f32 1.0, %v1369
    %v1371 = vmul.f32 %v1368, %v1370
    %v1372 = vadd.f32 %v1368, %v1371
    %vm1373 = vweird.f32 %v1352
    %vm1374 = vweird.f32 %v1368
    %vm1375 = vmor %vm1373, %vm1374
    %v1376 = vsel %vm1375, %v1368, %v1372
    %v1377 = vand.u32 2147483647, %v1352
    %vm1378 = vcmp.eq.f32.partialorder %v1377, 8.507059e+37
    %v1379 = vand.u32 %v1352, 2147483648
    %v1380 = vor.u32 1.1754944e-38, %v1379
    %v1381 = vsel %vm1378, %v1380, %v1376
    %v1382 = vmul.f32 1.0, %v1381
    %v1383 = vtanh.pop %v1343
    %v1384 = vtanh.pop %v1344
    %1386 = vrot.lane.b32.xlu0 %v1232, 32
    %v1387 = vpop.permute.xlu0 %1386
    %v1389 = vmul.f32 %v1367, %v1387
    %1391 = vrot.lane.b32.xlu0 %v1383, 64
    %v1392 = vpop.permute.xlu0 %1391
    %v1394 = vmul.f32 %v1367, %v1392
    %1396 = vrot.lane.b32.xlu0 %v1394, 32
    %v1397 = vpop.permute.xlu0 %1396
    %v1399 = vadd.f32 %v1389, %v1397
    %v1400 = vmul.f32 %v1382, %v1232
    %1402 = vrot.lane.b32.xlu0 %v1384, 64
    %v1403 = vpop.permute.xlu0 %1402
    %v1405 = vmul.f32 %v1382, %v1403
    %1407 = vrot.lane.b32.xlu0 %v1405, 32
    %v1408 = vpop.permute.xlu0 %1407
    %v1410 = vadd.f32 %v1400, %v1408
    %1412 = vrot.lane.b32.xlu0 %v1399, 96
    %v1413 = vpop.permute.xlu0 %1412
    %v1415 = vsel %vm87, %v1413, %v1410
    %v1416 = vtanh.pop %v1415
    %1418 = vrot.lane.b32.xlu0 %v1416, 96
    %v1419 = vpop.permute.xlu0 %1418
    %v1421 = vmul.f32 %v1367, %v1419
    %1422 = vrot.lane.b32.xlu0 %v1416, 64
    %v1423 = vpop.permute.xlu0 %1422
    %v1425 = vmul.f32 %v1382, %v1423
    %1427 = vrot.lane.b32.xlu0 %v1421, 32
    %v1428 = vpop.permute.xlu0 %1427
    %s1430 = scalar_lea.vmem [#allocation3], 12
    %1431 = vst.msk [vmem:[%s1430] sm:$0x3] %vm326, %v1428
    %1433 = vrot.lane.b32.xlu0 %v1425, 32
    %v1434 = vpop.permute.xlu0 %1433
    %s1436 = scalar_lea.vmem [#allocation4], 2
    %1437 = vst.msk [vmem:[%s1436] sm:$0x3] %vm326, %v1434
    %1438 = vrot.lane.b32.xlu0 %v1425, 64
    %v1439 = vpop.permute.xlu0 %1438
    %v1441 = vsel %vm87, %v1428, %v1439
    %v1442 = vld [vmem:[%s159] sm:$0xf]
    %v1443 = vld [vmem:[#allocation2] sm:$0xf]
    %1445 = vst [vmem:[#allocation1] ss:$4 sm:$0xff] %v1443
    %v1446 = vld.sshfl [vmem:[#allocation1 + $0x8] sm:$0xff pattern:$0x73625140]
    %v1448 = vpack.c.bf16 %v1441, %v1441
    %v1449 = vld [vmem:[%s2] sm:$0xff]
    %v1450 = vld [vmem:[%s2 + $0x8] sm:$0xff]
    %v1451 = vld [vmem:[%s2 + $0x10] sm:$0xff]
    %v1452 = vld [vmem:[%s2 + $0x18] sm:$0xff]
    %v1453 = vld [vmem:[%s2 + $0x20] sm:$0xff]
    %v1454 = vld [vmem:[%s2 + $0x28] sm:$0xff]
    %v1455 = vld [vmem:[%s2 + $0x30] sm:$0xff]
    %v1456 = vld [vmem:[%s2 + $0x38] sm:$0xff]
    %v1465 = vunpack.c.l.b16 %v1449
    %v1466 = vunpack.c.h.b16 %v1449
    %v1467 = vunpack.c.l.b16 %v1450
    %v1468 = vunpack.c.h.b16 %v1450
    %v1469 = vunpack.c.l.b16 %v1451
    %v1470 = vunpack.c.h.b16 %v1451
    %v1471 = vunpack.c.l.b16 %v1452
    %v1472 = vunpack.c.h.b16 %v1452
    %v1473 = vunpack.c.l.b16 %v1453
    %v1474 = vunpack.c.h.b16 %v1453
    %v1475 = vunpack.c.l.b16 %v1454
    %v1476 = vunpack.c.h.b16 %v1454
    %v1477 = vunpack.c.l.b16 %v1455
    %v1478 = vunpack.c.h.b16 %v1455
    %v1479 = vunpack.c.l.b16 %v1456
    %v1480 = vunpack.c.h.b16 %v1456
    %v1481 = vpack.c.b16 %v1467, %v1465
    %v1482 = vpack.c.b16 %v1468, %v1466
    %v1483 = vpack.c.b16 %v1471, %v1469
    %v1484 = vpack.c.b16 %v1472, %v1470
    %v1485 = vpack.c.b16 %v1475, %v1473
    %v1486 = vpack.c.b16 %v1476, %v1474
    %v1487 = vpack.c.b16 %v1479, %v1477
    %v1488 = vpack.c.b16 %v1480, %v1478
    %v1498 = vsel %vm213, %v1448, 0
    %1500 = vmatpush.bf16.msra.mxu0 0
    %1501 = vmatpush.bf16.msra.mxu0 0
    %1502 = vmatpush.bf16.msra.mxu0 0
    %1503 = vmatpush.bf16.msra.mxu0 0
    %1504 = vmatpush.bf16.msra.mxu0 %v1487
    %1505 = vmatpush.bf16.msra.mxu0 %v1485
    %1506 = vmatpush.bf16.msra.mxu0 %v1483
    %1507 = vmatpush.bf16.msra.mxu0 %v1481
    %1508 = vmatmul.bf16.gmra.mxu0 %v1498
    %v1509 = vpop.f32.mrf.mxu0
    %v1510 = vadd.f32 0.0, %v1509
    %v1511 = vpop.f32.mrf.mxu0
    %1512 = vdwg.mxu0
    %1513 = vmatpush.bf16.msra.mxu0 0
    %1514 = vmatpush.bf16.msra.mxu0 0
    %1515 = vmatpush.bf16.msra.mxu0 0
    %1516 = vmatpush.bf16.msra.mxu0 0
    %1517 = vmatpush.bf16.msra.mxu0 %v1488
    %1518 = vmatpush.bf16.msra.mxu0 %v1486
    %1519 = vmatpush.bf16.msra.mxu0 %v1484
    %1520 = vmatpush.bf16.msra.mxu0 %v1482
    %1521 = vmatmul.bf16.gmra.mxu0 %v1498
    %v1522 = vpop.f32.mrf.mxu0
    %v1523 = vadd.f32 0.0, %v1522
    %v1524 = vpop.f32.mrf.mxu0
    %1525 = vdwg.mxu0
    %v1526 = vadd.f32 %v1442, %v1510
    %v1527 = vadd.f32 %v1446, %v1523
    %v1528 = vxor.u32 %v1526, 2147483648
    %v1529 = vxor.u32 %v1527, 2147483648
    %v1530 = vmul.f32 %v1528, 1.442695
    %v1531 = vpow.pop %v1530
    %v1532 = vmul.f32 %v1529, 1.442695
    %v1533 = vpow.pop %v1532
    %v1534 = vadd.f32 %v1531, 1.0
    %v1535 = vadd.f32 %v1533, 1.0
    %v1536 = vrcp.pop %v1534
    %v1537 = vmul.f32 %v1534, %v1536
    %v1538 = vsub.f32 1.0, %v1537
    %v1539 = vmul.f32 %v1536, %v1538
    %v1540 = vadd.f32 %v1536, %v1539
    %vm1541 = vweird.f32 %v1534
    %vm1542 = vweird.f32 %v1536
    %vm1543 = vmor %vm1541, %vm1542
    %v1544 = vsel %vm1543, %v1536, %v1540
    %v1545 = vand.u32 2147483647, %v1534
    %vm1546 = vcmp.eq.f32.partialorder %v1545, 8.507059e+37
    %v1547 = vand.u32 %v1534, 2147483648
    %v1548 = vor.u32 1.1754944e-38, %v1547
    %v1549 = vsel %vm1546, %v1548, %v1544
    %v1550 = vmul.f32 1.0, %v1549
    %v1551 = vrcp.pop %v1535
    %v1552 = vmul.f32 %v1535, %v1551
    %v1553 = vsub.f32 1.0, %v1552
    %v1554 = vmul.f32 %v1551, %v1553
    %v1555 = vadd.f32 %v1551, %v1554
    %vm1556 = vweird.f32 %v1535
    %vm1557 = vweird.f32 %v1551
    %vm1558 = vmor %vm1556, %vm1557
    %v1559 = vsel %vm1558, %v1551, %v1555
    %v1560 = vand.u32 2147483647, %v1535
    %vm1561 = vcmp.eq.f32.partialorder %v1560, 8.507059e+37
    %v1562 = vand.u32 %v1535, 2147483648
    %v1563 = vor.u32 1.1754944e-38, %v1562
    %v1564 = vsel %vm1561, %v1563, %v1559
    %v1565 = vmul.f32 1.0, %v1564
    %v1566 = vtanh.pop %v1526
    %v1567 = vtanh.pop %v1527
    %1569 = vrot.lane.b32.xlu0 %v1415, 32
    %v1570 = vpop.permute.xlu0 %1569
    %v1572 = vmul.f32 %v1550, %v1570
    %1574 = vrot.lane.b32.xlu0 %v1566, 64
    %v1575 = vpop.permute.xlu0 %1574
    %v1577 = vmul.f32 %v1550, %v1575
    %1579 = vrot.lane.b32.xlu0 %v1577, 32
    %v1580 = vpop.permute.xlu0 %1579
    %v1582 = vadd.f32 %v1572, %v1580
    %v1583 = vmul.f32 %v1565, %v1415
    %1585 = vrot.lane.b32.xlu0 %v1567, 64
    %v1586 = vpop.permute.xlu0 %1585
    %v1588 = vmul.f32 %v1565, %v1586
    %1590 = vrot.lane.b32.xlu0 %v1588, 32
    %v1591 = vpop.permute.xlu0 %1590
    %v1593 = vadd.f32 %v1583, %v1591
    %1595 = vrot.lane.b32.xlu0 %v1582, 96
    %v1596 = vpop.permute.xlu0 %1595
    %v1598 = vsel %vm87, %v1596, %v1593
    %v1599 = vtanh.pop %v1598
    %1601 = vrot.lane.b32.xlu0 %v1599, 96
    %v1602 = vpop.permute.xlu0 %1601
    %v1604 = vmul.f32 %v1550, %v1602
    %1605 = vrot.lane.b32.xlu0 %v1599, 64
    %v1606 = vpop.permute.xlu0 %1605
    %v1608 = vmul.f32 %v1565, %v1606
    %1610 = vrot.lane.b32.xlu0 %v1604, 32
    %v1611 = vpop.permute.xlu0 %1610
    %s1613 = scalar_lea.vmem [#allocation3], 14
    %1614 = vst.msk [vmem:[%s1613] sm:$0x3] %vm326, %v1611
    %1616 = vrot.lane.b32.xlu0 %v1608, 32
    %v1617 = vpop.permute.xlu0 %1616
    %1619 = vst.msk [vmem:[#allocation4] sm:$0x3] %vm326, %v1617
    %v1620 = vld [vmem:[#allocation3] sm:$0x3]
    %v1621 = vld [vmem:[#allocation3 + $0x2] sm:$0x3]
    %v1622 = vld [vmem:[#allocation3 + $0x4] sm:$0x3]
    %v1623 = vld [vmem:[#allocation3 + $0x6] sm:$0x3]
    %v1624 = vld [vmem:[#allocation3 + $0x8] sm:$0x3]
    %v1625 = vld [vmem:[#allocation3 + $0xa] sm:$0x3]
    %v1626 = vld [vmem:[#allocation3 + $0xc] sm:$0x3]
    %v1627 = vld [vmem:[#allocation3 + $0xe] sm:$0x3]
    %1636 = vst [vmem:[#allocation1] ss:$4 sm:$0xff] %v1620
    %s1637 = scalar_lea.vmem [#allocation1], 1
    %1638 = vst [vmem:[%s1637] ss:$4 sm:$0xff] %v1621
    %s1639 = scalar_lea.vmem [#allocation1], 2
    %1640 = vst [vmem:[%s1639] ss:$4 sm:$0xff] %v1622
    %s1641 = scalar_lea.vmem [#allocation1], 3
    %1642 = vst [vmem:[%s1641] ss:$4 sm:$0xff] %v1623
    %s1643 = scalar_lea.vmem [#allocation1], 32
    %1644 = vst [vmem:[%s1643] ss:$4 sm:$0xff] %v1624
    %s1645 = scalar_lea.vmem [#allocation1], 33
    %1646 = vst [vmem:[%s1645] ss:$4 sm:$0xff] %v1625
    %s1647 = scalar_lea.vmem [#allocation1], 34
    %1648 = vst [vmem:[%s1647] ss:$4 sm:$0xff] %v1626
    %s1649 = scalar_lea.vmem [#allocation1], 35
    %1650 = vst [vmem:[%s1649] ss:$4 sm:$0xff] %v1627
    %v1651 = vld.sshfl [vmem:[#allocation1] sm:$0xff pattern:$0x73625140]
    %v1652 = vld.sshfl [vmem:[#allocation1 + $0x20] sm:$0xff pattern:$0x73625140]
    %v1655 = vpack.c.bf16 %v1652, %v1651
    %v1656 = vld [vmem:[#allocation4] sm:$0x3]
    %v1657 = vld [vmem:[#allocation4 + $0x2] sm:$0x3]
    %v1658 = vld [vmem:[#allocation4 + $0x4] sm:$0x3]
    %v1659 = vld [vmem:[#allocation4 + $0x6] sm:$0x3]
    %v1660 = vld [vmem:[#allocation4 + $0x8] sm:$0x3]
    %v1661 = vld [vmem:[#allocation4 + $0xa] sm:$0x3]
    %v1662 = vld [vmem:[#allocation4 + $0xc] sm:$0x3]
    %v1663 = vld [vmem:[#allocation4 + $0xe] sm:$0x3]
    %1672 = vst [vmem:[#allocation1] ss:$4 sm:$0xff] %v1656
    %s1673 = scalar_lea.vmem [#allocation1], 1
    %1674 = vst [vmem:[%s1673] ss:$4 sm:$0xff] %v1657
    %s1675 = scalar_lea.vmem [#allocation1], 2
    %1676 = vst [vmem:[%s1675] ss:$4 sm:$0xff] %v1658
    %s1677 = scalar_lea.vmem [#allocation1], 3
    %1678 = vst [vmem:[%s1677] ss:$4 sm:$0xff] %v1659
    %s1679 = scalar_lea.vmem [#allocation1], 32
    %1680 = vst [vmem:[%s1679] ss:$4 sm:$0xff] %v1660
    %s1681 = scalar_lea.vmem [#allocation1], 33
    %1682 = vst [vmem:[%s1681] ss:$4 sm:$0xff] %v1661
    %s1683 = scalar_lea.vmem [#allocation1], 34
    %1684 = vst [vmem:[%s1683] ss:$4 sm:$0xff] %v1662
    %s1685 = scalar_lea.vmem [#allocation1], 35
    %1686 = vst [vmem:[%s1685] ss:$4 sm:$0xff] %v1663
    %v1687 = vld.sshfl [vmem:[#allocation1] sm:$0xff pattern:$0x73625140]
    %v1688 = vld.sshfl [vmem:[#allocation1 + $0x20] sm:$0xff pattern:$0x73625140]
    %v1691 = vpack.c.bf16 %v1688, %v1687
    %v1692 = vld [vmem:[%s4] sm:$0xf]
    %v1693 = vld [vmem:[%s4 + $0x4] sm:$0xf]
    %v1694 = vld [vmem:[%s4 + $0x8] sm:$0xf]
    %v1695 = vld [vmem:[%s4 + $0xc] sm:$0xf]
    %v1696 = vld [vmem:[%s4 + $0x10] sm:$0xf]
    %v1697 = vld [vmem:[%s4 + $0x14] sm:$0xf]
    %v1698 = vld [vmem:[%s4 + $0x18] sm:$0xf]
    %v1699 = vld [vmem:[%s4 + $0x1c] sm:$0xf]
    %v1704 = vunpack.c.l.b16 %v1696
    %v1705 = vunpack.c.l.b16 %v1697
    %v1706 = vunpack.c.l.b16 %v1698
    %v1707 = vunpack.c.l.b16 %v1699
    %v1708 = vpack.c.b16 %v1705, %v1704
    %v1709 = vpack.c.b16 %v1707, %v1706
    %v1713 = vsel %vm87, %v1691, 0
    %1715 = vmatpush.bf16.msra.mxu0 0
    %1716 = vmatpush.bf16.msra.mxu0 0
    %1717 = vmatpush.bf16.msra.mxu0 0
    %1718 = vmatpush.bf16.msra.mxu0 0
    %1719 = vmatpush.bf16.msra.mxu0 0
    %1720 = vmatpush.bf16.msra.mxu0 0
    %1721 = vmatpush.bf16.msra.mxu0 %v1709
    %1722 = vmatpush.bf16.msra.mxu0 %v1708
    %1723 = vmatmul.bf16.gmra.mxu0 %v1713
    %v1724 = vpop.f32.mrf.mxu0
    %v1725 = vadd.f32 0.0, %v1724
    %v1726 = vpop.f32.mrf.mxu0
    %v1727 = vadd.f32 0.0, %v1726
    %1728 = vdwg.mxu0
    %v1733 = vunpack.c.l.b16 %v1692
    %v1734 = vunpack.c.l.b16 %v1693
    %v1735 = vunpack.c.l.b16 %v1694
    %v1736 = vunpack.c.l.b16 %v1695
    %v1737 = vpack.c.b16 %v1734, %v1733
    %v1738 = vpack.c.b16 %v1736, %v1735
    %v1742 = vsel %vm87, %v1655, 0
    %1744 = vmatpush.bf16.msra.mxu0 0
    %1745 = vmatpush.bf16.msra.mxu0 0
    %1746 = vmatpush.bf16.msra.mxu0 0
    %1747 = vmatpush.bf16.msra.mxu0 0
    %1748 = vmatpush.bf16.msra.mxu0 0
    %1749 = vmatpush.bf16.msra.mxu0 0
    %1750 = vmatpush.bf16.msra.mxu0 %v1738
    %1751 = vmatpush.bf16.msra.mxu0 %v1737
    %1752 = vmatmul.bf16.gmra.mxu0 %v1742
    %v1753 = vpop.f32.mrf.mxu0
    %v1754 = vadd.f32 %v1725, %v1753
    %v1755 = vpop.f32.mrf.mxu0
    %v1756 = vadd.f32 %v1727, %v1755
    %1757 = vdwg.mxu0
    %v1758 = vld [vmem:[%s5] sm:$0x1]
    %v1760 = vperm.slane %v1758, 0
    %v1762 = vadd.f32 %v1754, %v1760
    %v1763 = vadd.f32 %v1756, %v1760
    %v1766 = vrot.slane %v1762, 2
    %v1767 = vrot.slane %v1762, 4
    %v1768 = vrot.slane %v1762, 6
    %v1769 = vrot.slane %v1763, 2
    %v1770 = vrot.slane %v1763, 4
    %v1771 = vrot.slane %v1763, 6
    %vm1778 = vcmask 123904
    %1779 = vst.msk [vmem:[#allocation5] sm:$0x3] %vm1778, %v1762
    %1780 = vst.msk [vmem:[#allocation5 + $0x2] sm:$0x3] %vm1778, %v1766
    %1781 = vst.msk [vmem:[#allocation5 + $0x4] sm:$0x3] %vm1778, %v1767
    %1782 = vst.msk [vmem:[#allocation5 + $0x6] sm:$0x3] %vm1778, %v1768
    %1783 = vst.msk [vmem:[#allocation5 + $0x8] sm:$0x3] %vm1778, %v1763
    %1784 = vst.msk [vmem:[#allocation5 + $0xa] sm:$0x3] %vm1778, %v1769
    %1785 = vst.msk [vmem:[#allocation5 + $0xc] sm:$0x3] %vm1778, %v1770
    %1786 = vst.msk [vmem:[#allocation5 + $0xe] sm:$0x3] %vm1778, %v1771
    // Predicated region
    $region26: #{lstm_decoder_forward.1} parent=1 // pred_check
      _
    $region27: #{lstm_decoder_forward.1} parent=1 // pred_check_branch
      %1788 = sbr.rel (0) target = $region29
    $region28: #{lstm_decoder_forward.1} parent=1 // pred_region
      %1790 = vsyncadd [#allocation6], 0
      %s1791 = sshll.u32 [#allocation5], 4
      %s1792 = int_to_ptr.vmem [resolvable:$true] %s1791
      %s1793 = sshll.u32 %s6, 4
      %s1794 = int_to_ptr.hbm [resolvable:$true] %s1793
      %1799 = dma.vmem_to_hbm [thread:$0]  %s1792, 256, %s1794, [#allocation6], 32, 32, 2
    $region29: #{lstm_decoder_forward.1} parent=1 // pred_fallthru
      _
    // Predicated region
    $region30: #{lstm_decoder_forward.1} parent=1 // pred_check
      _
    $region31: #{lstm_decoder_forward.1} parent=1 // pred_check_branch
      %1801 = sbr.rel (0) target = $region33
    $region32: #{lstm_decoder_forward.1} parent=1 // pred_region
      %1803 = dma.done [#allocation6], 256
    $region33: #{lstm_decoder_forward.1} parent=1 // pred_fallthru
      _
    %1804 = vsyncpa [#allocation6], 1

</llo_original>
